<compile_context>
chip_gen: v5e
topology: v5e:2x2
jax: 0.10.0
libtpu: 0.0.40
codegen_flags: <defaults>
</compile_context>

<pallas_src>
import functools

import jax
import jax.numpy as jnp
from jax import lax
from jax.experimental import pallas as pl
from jax.experimental.pallas import tpu as pltpu

HIDDEN = 64          # stand-in for the module's hard-coded 512
POOLSIZE = 10        # self.poolsize
VOCAB = 50


# ----------------------------- Pallas kernels -----------------------------

def _linear_kernel(x_ref, w_ref, b_ref, o_ref, acc_ref, *, activation):
    """One (M, tn) output tile; grid axis 1 is the K reduction."""
    k = pl.program_id(1)

    @pl.when(k == 0)
    def _():
        acc_ref[...] = jnp.zeros_like(acc_ref)

    acc_ref[...] += jnp.dot(x_ref[...], w_ref[...],
                            preferred_element_type=jnp.float32)

    @pl.when(k == pl.num_programs(1) - 1)
    def _():
        y = acc_ref[...] + b_ref[...]
        if activation == "tanh":
            y = jnp.tanh(y)
        o_ref[...] = y


def _pick_tile(dim, max_tile=512):
    if dim <= max_tile:
        return dim
    for t in (max_tile, 256, 128):
        if dim % t == 0:
            return t
    return dim


def tiled_linear_pallas(x, w, b, activation=None, max_tile=512):
    """y = act(x @ w + b).  x:(M,K), w:(K,N), b:(N,).  Tiled over N and K."""
    M, K = x.shape
    K2, N = w.shape
    assert K == K2
    tn = _pick_tile(N, max_tile)
    tk = _pick_tile(K, max_tile)
    grid = (N // tn, K // tk)

    # double-buffered inputs + output + accumulator, f32 bytes
    est = 4 * (2 * M * tk + 2 * tk * tn + 2 * tn + 2 * M * tn + M * tn)
    cp = {"dimension_semantics": ("parallel", "arbitrary")}
    if est > 16 * 1024 * 1024:
        cp["vmem_limit_bytes"] = int(min(2 * est, 64 * 1024 * 1024))

    kernel = functools.partial(_linear_kernel, activation=activation)
    return pl.pallas_call(
        kernel,
        out_shape=jax.ShapeDtypeStruct((M, N), jnp.float32),
        grid_spec=pltpu.PrefetchScalarGridSpec(
            num_scalar_prefetch=0,
            grid=grid,
            in_specs=[pl.BlockSpec((M, tk), lambda j, k: (0, k)),
                      pl.BlockSpec((tk, tn), lambda j, k: (k, j)),
                      pl.BlockSpec((1, tn), lambda j, k: (0, j))],
            out_specs=pl.BlockSpec((M, tn), lambda j, k: (0, j)),
            scratch_shapes=[pltpu.VMEM((M, tn), jnp.float32)]),
        compiler_params=pltpu.CompilerParams(**cp),
    )(x, w, b.reshape(1, N))


def _pool_kernel(pm_ref, x_ref, o_ref):
    o_ref[...] = jnp.dot(pm_ref[...], x_ref[...],
                         preferred_element_type=jnp.float32)


def pool_matmul_pallas(pool_mat, x):
    """Adaptive-avg-pool over the leading axis as a single MXU matmul.
       pool_mat:(P, L) averaging matrix, x:(L, C) -> (P, C)."""
    Pd, L = pool_mat.shape
    _, C = x.shape
    return pl.pallas_call(
        _pool_kernel,
        out_shape=jax.ShapeDtypeStruct((Pd, C), jnp.float32),
        grid=(1,),
        in_specs=[pl.BlockSpec((Pd, L), lambda i: (0, 0)),
                  pl.BlockSpec((L, C), lambda i: (0, 0))],
        out_specs=pl.BlockSpec((Pd, C), lambda i: (0, 0)),
    )(pool_mat, x)


def _decoder_kernel(e_ref, m_ref, mask_ref, wq_ref, bq_ref, wo_ref, bo_ref,
                    dec_ref, attn_ref):
    """Fused decoder: q = tanh(e@Wq+bq); masked softmax attention over memory;
       dec = tanh([q,ctx]@Wo+bo).  Single grid step handles all batches
       (static unroll over B; every matmul stays 2-D)."""
    B, T, H = e_ref.shape
    for b in range(B):                                   # static unroll
        e_b = e_ref[b]                                   # (T, H)
        q_b = jnp.tanh(jnp.dot(e_b, wq_ref[...],
                               preferred_element_type=jnp.float32)
                       + bq_ref[...])                    # (T, H)
        m_b = m_ref[b]                                   # (M, H)
        s = lax.dot_general(q_b, m_b, (((1,), (1,)), ((), ())),
                            preferred_element_type=jnp.float32)   # (T, M)
        s = s + mask_ref[b]                              # additive length mask
        s = s - jnp.max(s, axis=-1, keepdims=True)
        p = jnp.exp(s)
        p = p * pl.reciprocal(jnp.sum(p, axis=-1, keepdims=True), approx=True)
        attn_ref[b] = p
        ctx = jnp.dot(p, m_b, preferred_element_type=jnp.float32)  # (T, H)
        # [q, ctx] @ Wo  ==  q @ Wo[:H] + ctx @ Wo[H:]  (avoids lane concat)
        dec_b = jnp.tanh(
            jnp.dot(q_b, wo_ref[:H, :], preferred_element_type=jnp.float32)
            + jnp.dot(ctx, wo_ref[H:, :], preferred_element_type=jnp.float32)
            + bo_ref[...])
        dec_ref[b] = dec_b


def decoder_attention_pallas(e_bth, m_bmh, mask_btm, wq, bq, wo, bo):
    B, T, H = e_bth.shape
    Mlen = m_bmh.shape[1]
    return pl.pallas_call(
        _decoder_kernel,
        out_shape=(jax.ShapeDtypeStruct((B, T, H), jnp.float32),
                   jax.ShapeDtypeStruct((B, T, Mlen), jnp.float32)),
        grid=(1,),
        in_specs=[pl.BlockSpec((B, T, H), lambda i: (0, 0, 0)),
                  pl.BlockSpec((B, Mlen, H), lambda i: (0, 0, 0)),
                  pl.BlockSpec((B, T, Mlen), lambda i: (0, 0, 0)),
                  pl.BlockSpec((H, H), lambda i: (0, 0)),
                  pl.BlockSpec((1, H), lambda i: (0, 0)),
                  pl.BlockSpec((2 * H, H), lambda i: (0, 0)),
                  pl.BlockSpec((1, H), lambda i: (0, 0))],
        out_specs=(pl.BlockSpec((B, T, H), lambda i: (0, 0, 0)),
                   pl.BlockSpec((B, T, Mlen), lambda i: (0, 0, 0))),
        compiler_params=pltpu.CompilerParams(dimension_semantics=("arbitrary",)),
    )(e_bth, m_bmh, mask_btm, wq, bq.reshape(1, H), wo, bo.reshape(1, H))


# ------------------------------ model pieces ------------------------------

def init_params(key):
    ks = jax.random.split(key, 8)

    def w(k, shape, scale=0.05):
        return (scale * jax.random.normal(k, shape)).astype(jnp.float32)

    PH = POOLSIZE * HIDDEN
    zeros = lambda n: jnp.zeros((n,), jnp.float32)
    return {
        "emb_src": w(ks[0], (VOCAB, HIDDEN)),
        "emb_sim": w(ks[1], (VOCAB, HIDDEN)),
        "emb_tgt": w(ks[2], (VOCAB, HIDDEN)),
        # encoder enc_out / memory_bank projections fused as (H, 2H)
        "enc_w12": w(ks[3], (HIDDEN, 2 * HIDDEN)), "enc_b12": zeros(2 * HIDDEN),
        "enc2_w12": w(ks[4], (HIDDEN, 2 * HIDDEN)), "enc2_b12": zeros(2 * HIDDEN),
        "lin_w": w(ks[5], (PH, PH), 0.02), "lin_b": zeros(PH),      # self.linear
        "dec_wq": w(ks[6], (HIDDEN, HIDDEN)), "dec_bq": zeros(HIDDEN),
        "dec_wo": w(ks[7], (2 * HIDDEN, HIDDEN)), "dec_bo": zeros(HIDDEN),
    }


def make_pool_matrix(L, out_size):
    """PyTorch AdaptiveAvgPool1d windows as a (out_size, L) averaging matrix."""
    rows = []
    for i in range(out_size):
        s = (i * L) // out_size
        e = ((i + 1) * L + out_size - 1) // out_size
        rows.append(jnp.zeros((L,), jnp.float32).at[s:e].set(1.0 / (e - s)))
    return jnp.stack(rows)


def run_encoder(tokens, lengths, emb, w12, b12):
    """Synthetic EncoderBase: (enc_out, memory_bank, lengths), both (L,B,H).
       Both projections come out of one 128-lane matmul."""
    L, B, _ = tokens.shape
    e = emb[tokens[..., 0]]                              # (L, B, H) gather (XLA)
    y = tiled_linear_pallas(e.reshape(L * B, HIDDEN), w12, b12,
                            activation="tanh").reshape(L, B, 2 * HIDDEN)
    return y[..., :HIDDEN], y[..., HIDDEN:], lengths


def pooled_pair(sim_enc_out, sim_memory_bank, out_size):
    """self.pooler(x.transpose(2,0)).transpose(2,0) for both tensors, fused
       into a single (P, L) @ (L, 2*B*H) matmul."""
    L, B, H = sim_enc_out.shape
    x = jnp.concatenate([sim_enc_out.reshape(L, B * H),
                         sim_memory_bank.reshape(L, B * H)], axis=1)
    pooled = pool_matmul_pallas(make_pool_matrix(L, out_size), x)
    pe = pooled[:, :B * H].reshape(out_size, B, H)
    pm = pooled[:, B * H:].reshape(out_size, B, H)
    return pe, pm


def run_decoder(dec_in, memory_bank, memory_lengths, params):
    """Synthetic attention decoder: (T,B,1) tokens + (M,B,H) memory ->
       dec_out (T,B,H), attns {'std': (T,B,M)}.  Fully fused in one kernel."""
    T, B, _ = dec_in.shape
    Mlen = memory_bank.shape[0]
    e = params["emb_tgt"][dec_in[..., 0]]                # (T, B, H)
    e_bth = jnp.transpose(e, (1, 0, 2))                  # (B, T, H)
    m_bmh = jnp.transpose(memory_bank, (1, 0, 2))        # (B, M, H)

    # additive f32 length mask, built once in the (jitted) wrapper
    pos = jnp.arange(Mlen, dtype=jnp.int32)[None, None, :]
    valid = memory_lengths.astype(jnp.int32)[:, None, None]
    mask = jnp.broadcast_to(
        jnp.where(pos < valid, 0.0, -1e30).astype(jnp.float32), (B, T, Mlen))

    dec_b, attn_b = decoder_attention_pallas(
        e_bth, m_bmh, mask,
        params["dec_wq"], params["dec_bq"], params["dec_wo"], params["dec_bo"])
    return (jnp.transpose(dec_b, (1, 0, 2)),
            {"std": jnp.transpose(attn_b, (1, 0, 2))})


def nmt_forward(params, src, sim, tgt, src_lengths, sim_lengths,
                bptt=False, with_align=False):
    dec_in = tgt[:-1]

    src_enc_out, src_memory_bank, src_lens = run_encoder(
        src, src_lengths, params["emb_src"], params["enc_w12"], params["enc_b12"])
    sim_enc_out, sim_memory_bank, sim_lens = run_encoder(
        sim, sim_lengths, params["emb_sim"], params["enc2_w12"], params["enc2_b12"])

    B = src.shape[1]
    P = POOLSIZE
    sim_pooled_enc, sim_pooled_mb = pooled_pair(sim_enc_out, sim_memory_bank, P)

    sim_pre_enc = jnp.transpose(sim_pooled_enc, (1, 0, 2)).reshape(B, P * HIDDEN)
    sim_pre_mb = jnp.transpose(sim_pooled_mb, (1, 0, 2)).reshape(B, P * HIDDEN)
    # both self.linear applications share one tiled matmul (weight read once)
    lin_out = tiled_linear_pallas(
        jnp.concatenate([sim_pre_enc, sim_pre_mb], axis=0),
        params["lin_w"], params["lin_b"])
    sim_lineared_enc = jnp.transpose(
        lin_out[:B].reshape(B, P, HIDDEN), (1, 0, 2))
    sim_lineared_mb = jnp.transpose(
        lin_out[B:].reshape(B, P, HIDDEN), (1, 0, 2))

    src_out = jnp.concatenate(
        [jnp.zeros((P, B, src.shape[2]), dtype=src.dtype), src], axis=0)
    enc_out = jnp.concatenate([sim_lineared_enc, src_enc_out], axis=0)
    mb_out = jnp.concatenate([sim_lineared_mb, src_memory_bank], axis=0)

    if bptt is False:
        # TODO(synk): decoder.init_state depends on the concrete decoder type;
        # the synthetic attention decoder here is stateless, so it is a no-op.
        _ = (src_out, mb_out, enc_out)

    dec_out, attns = run_decoder(dec_in, mb_out, src_lens + P, params)
    return dec_out, attns


# ---------------------------------- main -----------------------------------

if __name__ == "__main__":
    key = jax.random.PRNGKey(0)
    kp, k1, k2, k3 = jax.random.split(key, 4)
    params = init_params(kp)

    SRC_LEN, SIM_LEN, TGT_LEN, BATCH = 12, 9, 7, 2
    src = jax.random.randint(k1, (SRC_LEN, BATCH, 1), 1, VOCAB, dtype=jnp.int32)
    sim = jax.random.randint(k2, (SIM_LEN, BATCH, 1), 1, VOCAB, dtype=jnp.int32)
    tgt = jax.random.randint(k3, (TGT_LEN, BATCH, 1), 1, VOCAB, dtype=jnp.int32)
    src_lengths = jnp.array([SRC_LEN, SRC_LEN - 3], dtype=jnp.int32)
    sim_lengths = jnp.array([SIM_LEN, SIM_LEN - 2], dtype=jnp.int32)

    fwd = jax.jit(nmt_forward)
    dec_out, attns = fwd(params, src, sim, tgt, src_lengths, sim_lengths)
    jax.block_until_ready(dec_out)
    jax.block_until_ready(attns["std"])

    assert dec_out.shape == (TGT_LEN - 1, BATCH, HIDDEN)
    assert attns["std"].shape == (TGT_LEN - 1, BATCH, POOLSIZE + SRC_LEN)
    print("KERNEL_OK")
</pallas_src>

<mosaic_0001>
module attributes {stable_mosaic.version = 11 : i64} {
  func.func @_linear_kernel(%arg0: i32, %arg1: i32, %arg2: memref<24x64xf32, #tpu.memory_space<vmem>>, %arg3: memref<64x128xf32, #tpu.memory_space<vmem>>, %arg4: memref<1x128xf32, #tpu.memory_space<vmem>>, %arg5: memref<24x128xf32, #tpu.memory_space<vmem>>, %arg6: memref<24x128xf32, #tpu.memory_space<vmem>>) attributes {dimension_semantics = [#tpu.dimension_semantics<parallel>, #tpu.dimension_semantics<arbitrary>], iteration_bounds = array<i64: 1, 1>, scalar_prefetch = 0 : i64, scratch_operands = 1 : i64, tpu.core_type = #tpu.core_type<tc>, window_params = [{transform_indices = @transform_0, window_bounds = array<i64: 24, 64>}, {transform_indices = @transform_1, window_bounds = array<i64: 64, 128>}, {transform_indices = @transform_2, window_bounds = array<i64: 1, 128>}, {transform_indices = @transform_3, window_bounds = array<i64: 24, 128>}]} {
    %c0_i32 = arith.constant 0 : i32
    %0 = arith.cmpi eq, %arg1, %c0_i32 : i32
    %1 = arith.extui %0 : i1 to i32
    %c0_i32_0 = arith.constant 0 : i32
    %2 = arith.cmpi ne, %1, %c0_i32_0 : i32
    scf.if %2 {
      %cst_10 = arith.constant 0.000000e+00 : f32
      %12 = vector.broadcast %cst_10 : f32 to vector<24x128xf32>
      %c0_11 = arith.constant 0 : index
      %c0_12 = arith.constant 0 : index
      %13 = vector.load %arg6[%c0_11, %c0_12] : memref<24x128xf32, #tpu.memory_space<vmem>>, vector<24x128xf32>
      tpu.vector_store %arg6[%c0_11, %c0_12], %12 {strides = array<i32>} : memref<24x128xf32, #tpu.memory_space<vmem>>, vector<24x128xf32>,
    } else {
    }
    %c0 = arith.constant 0 : index
    %c0_1 = arith.constant 0 : index
    %3 = vector.load %arg6[%c0, %c0_1] : memref<24x128xf32, #tpu.memory_space<vmem>>, vector<24x128xf32>
    %c0_2 = arith.constant 0 : index
    %c0_3 = arith.constant 0 : index
    %4 = vector.load %arg2[%c0_2, %c0_3] : memref<24x64xf32, #tpu.memory_space<vmem>>, vector<24x64xf32>
    %c0_4 = arith.constant 0 : index
    %c0_5 = arith.constant 0 : index
    %5 = vector.load %arg3[%c0_4, %c0_5] : memref<64x128xf32, #tpu.memory_space<vmem>>, vector<64x128xf32>
    %cst = arith.constant dense<0.000000e+00> : vector<24x128xf32>
    %6 = tpu.matmul %4, %5, %cst {dimension_numbers = #tpu.dot_dimension_numbers<[1], [0], [0], [1], [0, 0, 1, 1], [], []>} : vector<24x64xf32>, vector<64x128xf32>, vector<24x128xf32> -> vector<24x128xf32>
    %7 = arith.addf %3, %6 : vector<24x128xf32>
    %c0_6 = arith.constant 0 : index
    %c0_7 = arith.constant 0 : index
    %8 = vector.load %arg6[%c0_6, %c0_7] : memref<24x128xf32, #tpu.memory_space<vmem>>, vector<24x128xf32>
    tpu.vector_store %arg6[%c0_6, %c0_7], %7 {strides = array<i32>} : memref<24x128xf32, #tpu.memory_space<vmem>>, vector<24x128xf32>,
    %c0_i32_8 = arith.constant 0 : i32
    %9 = arith.cmpi eq, %arg1, %c0_i32_8 : i32
    %10 = arith.extui %9 : i1 to i32
    %c0_i32_9 = arith.constant 0 : i32
    %11 = arith.cmpi ne, %10, %c0_i32_9 : i32
    scf.if %11 {
      %c0_10 = arith.constant 0 : index
      %c0_11 = arith.constant 0 : index
      %12 = vector.load %arg6[%c0_10, %c0_11] : memref<24x128xf32, #tpu.memory_space<vmem>>, vector<24x128xf32>
      %c0_12 = arith.constant 0 : index
      %c0_13 = arith.constant 0 : index
      %13 = vector.load %arg4[%c0_12, %c0_13] : memref<1x128xf32, #tpu.memory_space<vmem>>, vector<1x128xf32>
      %14 = vector.broadcast %13 : vector<1x128xf32> to vector<24x128xf32>
      %15 = arith.addf %12, %14 : vector<24x128xf32>
      %16 = math.tanh %15 : vector<24x128xf32>
      %c0_14 = arith.constant 0 : index
      %c0_15 = arith.constant 0 : index
      %17 = vector.load %arg5[%c0_14, %c0_15] : memref<24x128xf32, #tpu.memory_space<vmem>>, vector<24x128xf32>
      tpu.vector_store %arg5[%c0_14, %c0_15], %16 {strides = array<i32>} : memref<24x128xf32, #tpu.memory_space<vmem>>, vector<24x128xf32>,
    } else {
    }
    return
  }
  func.func @transform_0(%arg0: i32, %arg1: i32) -> (i32, i32) {
    %c0_i32 = arith.constant 0 : i32
    %c0_i32_0 = arith.constant 0 : i32
    return %c0_i32, %arg1 : i32, i32
  }
  func.func @transform_1(%arg0: i32, %arg1: i32) -> (i32, i32) {
    %c0_i32 = arith.constant 0 : i32
    return %arg1, %arg0 : i32, i32
  }
  func.func @transform_2(%arg0: i32, %arg1: i32) -> (i32, i32) {
    %c0_i32 = arith.constant 0 : i32
    %c0_i32_0 = arith.constant 0 : i32
    return %c0_i32, %arg0 : i32, i32
  }
  func.func @transform_3(%arg0: i32, %arg1: i32) -> (i32, i32) {
    %c0_i32 = arith.constant 0 : i32
    %c0_i32_0 = arith.constant 0 : i32
    return %c0_i32, %arg0 : i32, i32
  }
}

module attributes {stable_mosaic.version = 11 : i64} {
  func.func @_linear_kernel(%arg0: i32, %arg1: i32, %arg2: memref<18x64xf32, #tpu.memory_space<vmem>>, %arg3: memref<64x128xf32, #tpu.memory_space<vmem>>, %arg4: memref<1x128xf32, #tpu.memory_space<vmem>>, %arg5: memref<18x128xf32, #tpu.memory_space<vmem>>, %arg6: memref<18x128xf32, #tpu.memory_space<vmem>>) attributes {dimension_semantics = [#tpu.dimension_semantics<parallel>, #tpu.dimension_semantics<arbitrary>], iteration_bounds = array<i64: 1, 1>, scalar_prefetch = 0 : i64, scratch_operands = 1 : i64, tpu.core_type = #tpu.core_type<tc>, window_params = [{transform_indices = @transform_0, window_bounds = array<i64: 18, 64>}, {transform_indices = @transform_1, window_bounds = array<i64: 64, 128>}, {transform_indices = @transform_2, window_bounds = array<i64: 1, 128>}, {transform_indices = @transform_3, window_bounds = array<i64: 18, 128>}]} {
    %c0_i32 = arith.constant 0 : i32
    %0 = arith.cmpi eq, %arg1, %c0_i32 : i32
    %1 = arith.extui %0 : i1 to i32
    %c0_i32_0 = arith.constant 0 : i32
    %2 = arith.cmpi ne, %1, %c0_i32_0 : i32
    scf.if %2 {
      %cst_10 = arith.constant 0.000000e+00 : f32
      %12 = vector.broadcast %cst_10 : f32 to vector<18x128xf32>
      %c0_11 = arith.constant 0 : index
      %c0_12 = arith.constant 0 : index
      %13 = vector.load %arg6[%c0_11, %c0_12] : memref<18x128xf32, #tpu.memory_space<vmem>>, vector<18x128xf32>
      tpu.vector_store %arg6[%c0_11, %c0_12], %12 {strides = array<i32>} : memref<18x128xf32, #tpu.memory_space<vmem>>, vector<18x128xf32>,
    } else {
    }
    %c0 = arith.constant 0 : index
    %c0_1 = arith.constant 0 : index
    %3 = vector.load %arg6[%c0, %c0_1] : memref<18x128xf32, #tpu.memory_space<vmem>>, vector<18x128xf32>
    %c0_2 = arith.constant 0 : index
    %c0_3 = arith.constant 0 : index
    %4 = vector.load %arg2[%c0_2, %c0_3] : memref<18x64xf32, #tpu.memory_space<vmem>>, vector<18x64xf32>
    %c0_4 = arith.constant 0 : index
    %c0_5 = arith.constant 0 : index
    %5 = vector.load %arg3[%c0_4, %c0_5] : memref<64x128xf32, #tpu.memory_space<vmem>>, vector<64x128xf32>
    %cst = arith.constant dense<0.000000e+00> : vector<18x128xf32>
    %6 = tpu.matmul %4, %5, %cst {dimension_numbers = #tpu.dot_dimension_numbers<[1], [0], [0], [1], [0, 0, 1, 1], [], []>} : vector<18x64xf32>, vector<64x128xf32>, vector<18x128xf32> -> vector<18x128xf32>
    %7 = arith.addf %3, %6 : vector<18x128xf32>
    %c0_6 = arith.constant 0 : index
    %c0_7 = arith.constant 0 : index
    %8 = vector.load %arg6[%c0_6, %c0_7] : memref<18x128xf32, #tpu.memory_space<vmem>>, vector<18x128xf32>
    tpu.vector_store %arg6[%c0_6, %c0_7], %7 {strides = array<i32>} : memref<18x128xf32, #tpu.memory_space<vmem>>, vector<18x128xf32>,
    %c0_i32_8 = arith.constant 0 : i32
    %9 = arith.cmpi eq, %arg1, %c0_i32_8 : i32
    %10 = arith.extui %9 : i1 to i32
    %c0_i32_9 = arith.constant 0 : i32
    %11 = arith.cmpi ne, %10, %c0_i32_9 : i32
    scf.if %11 {
      %c0_10 = arith.constant 0 : index
      %c0_11 = arith.constant 0 : index
      %12 = vector.load %arg6[%c0_10, %c0_11] : memref<18x128xf32, #tpu.memory_space<vmem>>, vector<18x128xf32>
      %c0_12 = arith.constant 0 : index
      %c0_13 = arith.constant 0 : index
      %13 = vector.load %arg4[%c0_12, %c0_13] : memref<1x128xf32, #tpu.memory_space<vmem>>, vector<1x128xf32>
      %14 = vector.broadcast %13 : vector<1x128xf32> to vector<18x128xf32>
      %15 = arith.addf %12, %14 : vector<18x128xf32>
      %16 = math.tanh %15 : vector<18x128xf32>
      %c0_14 = arith.constant 0 : index
      %c0_15 = arith.constant 0 : index
      %17 = vector.load %arg5[%c0_14, %c0_15] : memref<18x128xf32, #tpu.memory_space<vmem>>, vector<18x128xf32>
      tpu.vector_store %arg5[%c0_14, %c0_15], %16 {strides = array<i32>} : memref<18x128xf32, #tpu.memory_space<vmem>>, vector<18x128xf32>,
    } else {
    }
    return
  }
  func.func @transform_0(%arg0: i32, %arg1: i32) -> (i32, i32) {
    %c0_i32 = arith.constant 0 : i32
    %c0_i32_0 = arith.constant 0 : i32
    return %c0_i32, %arg1 : i32, i32
  }
  func.func @transform_1(%arg0: i32, %arg1: i32) -> (i32, i32) {
    %c0_i32 = arith.constant 0 : i32
    return %arg1, %arg0 : i32, i32
  }
  func.func @transform_2(%arg0: i32, %arg1: i32) -> (i32, i32) {
    %c0_i32 = arith.constant 0 : i32
    %c0_i32_0 = arith.constant 0 : i32
    return %c0_i32, %arg0 : i32, i32
  }
  func.func @transform_3(%arg0: i32, %arg1: i32) -> (i32, i32) {
    %c0_i32 = arith.constant 0 : i32
    %c0_i32_0 = arith.constant 0 : i32
    return %c0_i32, %arg0 : i32, i32
  }
}

module attributes {stable_mosaic.version = 11 : i64} {
  func.func @_pool_kernel(%arg0: i32, %arg1: memref<10x9xf32, #tpu.memory_space<vmem>>, %arg2: memref<9x256xf32, #tpu.memory_space<vmem>>, %arg3: memref<10x256xf32, #tpu.memory_space<vmem>>) attributes {dimension_semantics = [#tpu.dimension_semantics<arbitrary>], iteration_bounds = array<i64: 1>, scalar_prefetch = 0 : i64, scratch_operands = 0 : i64, tpu.core_type = #tpu.core_type<tc>, window_params = [{pipeline_mode = #tpu.pipeline_mode<synchronous>, transform_indices = @transform_0, window_bounds = array<i64: 10, 9>}, {pipeline_mode = #tpu.pipeline_mode<synchronous>, transform_indices = @transform_1, window_bounds = array<i64: 9, 256>}, {pipeline_mode = #tpu.pipeline_mode<synchronous>, transform_indices = @transform_2, window_bounds = array<i64: 10, 256>}]} {
    %c0 = arith.constant 0 : index
    %c0_0 = arith.constant 0 : index
    %0 = vector.load %arg1[%c0, %c0_0] : memref<10x9xf32, #tpu.memory_space<vmem>>, vector<10x9xf32>
    %c0_1 = arith.constant 0 : index
    %c0_2 = arith.constant 0 : index
    %1 = vector.load %arg2[%c0_1, %c0_2] : memref<9x256xf32, #tpu.memory_space<vmem>>, vector<9x256xf32>
    %cst = arith.constant dense<0.000000e+00> : vector<10x256xf32>
    %2 = tpu.matmul %0, %1, %cst {dimension_numbers = #tpu.dot_dimension_numbers<[1], [0], [0], [1], [0, 0, 1, 1], [], []>} : vector<10x9xf32>, vector<9x256xf32>, vector<10x256xf32> -> vector<10x256xf32>
    %c0_3 = arith.constant 0 : index
    %c0_4 = arith.constant 0 : index
    %3 = vector.load %arg3[%c0_3, %c0_4] : memref<10x256xf32, #tpu.memory_space<vmem>>, vector<10x256xf32>
    tpu.vector_store %arg3[%c0_3, %c0_4], %2 {strides = array<i32>} : memref<10x256xf32, #tpu.memory_space<vmem>>, vector<10x256xf32>,
    return
  }
  func.func @transform_0(%arg0: i32) -> (i32, i32) {
    %c0_i32 = arith.constant 0 : i32
    %c0_i32_0 = arith.constant 0 : i32
    %c0_i32_1 = arith.constant 0 : i32
    return %c0_i32, %c0_i32_0 : i32, i32
  }
  func.func @transform_1(%arg0: i32) -> (i32, i32) {
    %c0_i32 = arith.constant 0 : i32
    %c0_i32_0 = arith.constant 0 : i32
    %c0_i32_1 = arith.constant 0 : i32
    return %c0_i32, %c0_i32_0 : i32, i32
  }
  func.func @transform_2(%arg0: i32) -> (i32, i32) {
    %c0_i32 = arith.constant 0 : i32
    %c0_i32_0 = arith.constant 0 : i32
    %c0_i32_1 = arith.constant 0 : i32
    return %c0_i32, %c0_i32_0 : i32, i32
  }
}

module attributes {stable_mosaic.version = 11 : i64} {
  func.func @_linear_kernel(%arg0: i32, %arg1: i32, %arg2: memref<4x128xf32, #tpu.memory_space<vmem>>, %arg3: memref<128x128xf32, #tpu.memory_space<vmem>>, %arg4: memref<1x128xf32, #tpu.memory_space<vmem>>, %arg5: memref<4x128xf32, #tpu.memory_space<vmem>>, %arg6: memref<4x128xf32, #tpu.memory_space<vmem>>) attributes {dimension_semantics = [#tpu.dimension_semantics<parallel>, #tpu.dimension_semantics<arbitrary>], iteration_bounds = array<i64: 5, 5>, scalar_prefetch = 0 : i64, scratch_operands = 1 : i64, tpu.core_type = #tpu.core_type<tc>, window_params = [{transform_indices = @transform_0, window_bounds = array<i64: 4, 128>}, {transform_indices = @transform_1, window_bounds = array<i64: 128, 128>}, {transform_indices = @transform_2, window_bounds = array<i64: 1, 128>}, {transform_indices = @transform_3, window_bounds = array<i64: 4, 128>}]} {
    %c0_i32 = arith.constant 0 : i32
    %0 = arith.cmpi eq, %arg1, %c0_i32 : i32
    %1 = arith.extui %0 : i1 to i32
    %c0_i32_0 = arith.constant 0 : i32
    %2 = arith.cmpi ne, %1, %c0_i32_0 : i32
    scf.if %2 {
      %cst_9 = arith.constant 0.000000e+00 : f32
      %12 = vector.broadcast %cst_9 : f32 to vector<4x128xf32>
      %c0_10 = arith.constant 0 : index
      %c0_11 = arith.constant 0 : index
      %13 = vector.load %arg6[%c0_10, %c0_11] : memref<4x128xf32, #tpu.memory_space<vmem>>, vector<4x128xf32>
      tpu.vector_store %arg6[%c0_10, %c0_11], %12 {strides = array<i32>} : memref<4x128xf32, #tpu.memory_space<vmem>>, vector<4x128xf32>,
    } else {
    }
    %c0 = arith.constant 0 : index
    %c0_1 = arith.constant 0 : index
    %3 = vector.load %arg6[%c0, %c0_1] : memref<4x128xf32, #tpu.memory_space<vmem>>, vector<4x128xf32>
    %c0_2 = arith.constant 0 : index
    %c0_3 = arith.constant 0 : index
    %4 = vector.load %arg2[%c0_2, %c0_3] : memref<4x128xf32, #tpu.memory_space<vmem>>, vector<4x128xf32>
    %c0_4 = arith.constant 0 : index
    %c0_5 = arith.constant 0 : index
    %5 = vector.load %arg3[%c0_4, %c0_5] : memref<128x128xf32, #tpu.memory_space<vmem>>, vector<128x128xf32>
    %cst = arith.constant dense<0.000000e+00> : vector<4x128xf32>
    %6 = tpu.matmul %4, %5, %cst {dimension_numbers = #tpu.dot_dimension_numbers<[1], [0], [0], [1], [0, 0, 1, 1], [], []>} : vector<4x128xf32>, vector<128x128xf32>, vector<4x128xf32> -> vector<4x128xf32>
    %7 = arith.addf %3, %6 : vector<4x128xf32>
    %c0_6 = arith.constant 0 : index
    %c0_7 = arith.constant 0 : index
    %8 = vector.load %arg6[%c0_6, %c0_7] : memref<4x128xf32, #tpu.memory_space<vmem>>, vector<4x128xf32>
    tpu.vector_store %arg6[%c0_6, %c0_7], %7 {strides = array<i32>} : memref<4x128xf32, #tpu.memory_space<vmem>>, vector<4x128xf32>,
    %c4_i32 = arith.constant 4 : i32
    %9 = arith.cmpi eq, %arg1, %c4_i32 : i32
    %10 = arith.extui %9 : i1 to i32
    %c0_i32_8 = arith.constant 0 : i32
    %11 = arith.cmpi ne, %10, %c0_i32_8 : i32
    scf.if %11 {
      %c0_9 = arith.constant 0 : index
      %c0_10 = arith.constant 0 : index
      %12 = vector.load %arg6[%c0_9, %c0_10] : memref<4x128xf32, #tpu.memory_space<vmem>>, vector<4x128xf32>
      %c0_11 = arith.constant 0 : index
      %c0_12 = arith.constant 0 : index
      %13 = vector.load %arg4[%c0_11, %c0_12] : memref<1x128xf32, #tpu.memory_space<vmem>>, vector<1x128xf32>
      %14 = vector.broadcast %13 : vector<1x128xf32> to vector<4x128xf32>
      %15 = arith.addf %12, %14 : vector<4x128xf32>
      %c0_13 = arith.constant 0 : index
      %c0_14 = arith.constant 0 : index
      %16 = vector.load %arg5[%c0_13, %c0_14] : memref<4x128xf32, #tpu.memory_space<vmem>>, vector<4x128xf32>
      tpu.vector_store %arg5[%c0_13, %c0_14], %15 {strides = array<i32>} : memref<4x128xf32, #tpu.memory_space<vmem>>, vector<4x128xf32>,
    } else {
    }
    return
  }
  func.func @transform_0(%arg0: i32, %arg1: i32) -> (i32, i32) {
    %c0_i32 = arith.constant 0 : i32
    %c0_i32_0 = arith.constant 0 : i32
    return %c0_i32, %arg1 : i32, i32
  }
  func.func @transform_1(%arg0: i32, %arg1: i32) -> (i32, i32) {
    %c0_i32 = arith.constant 0 : i32
    return %arg1, %arg0 : i32, i32
  }
  func.func @transform_2(%arg0: i32, %arg1: i32) -> (i32, i32) {
    %c0_i32 = arith.constant 0 : i32
    %c0_i32_0 = arith.constant 0 : i32
    return %c0_i32, %arg0 : i32, i32
  }
  func.func @transform_3(%arg0: i32, %arg1: i32) -> (i32, i32) {
    %c0_i32 = arith.constant 0 : i32
    %c0_i32_0 = arith.constant 0 : i32
    return %c0_i32, %arg0 : i32, i32
  }
}

module attributes {stable_mosaic.version = 11 : i64} {
  func.func @_decoder_kernel(%arg0: i32, %arg1: memref<2x6x64xf32, #tpu.memory_space<vmem>>, %arg2: memref<2x22x64xf32, #tpu.memory_space<vmem>>, %arg3: memref<2x6x22xf32, #tpu.memory_space<vmem>>, %arg4: memref<64x64xf32, #tpu.memory_space<vmem>>, %arg5: memref<1x64xf32, #tpu.memory_space<vmem>>, %arg6: memref<128x64xf32, #tpu.memory_space<vmem>>, %arg7: memref<1x64xf32, #tpu.memory_space<vmem>>, %arg8: memref<2x6x64xf32, #tpu.memory_space<vmem>>, %arg9: memref<2x6x22xf32, #tpu.memory_space<vmem>>) attributes {dimension_semantics = [#tpu.dimension_semantics<arbitrary>], iteration_bounds = array<i64: 1>, scalar_prefetch = 0 : i64, scratch_operands = 0 : i64, tpu.core_type = #tpu.core_type<tc>, window_params = [{pipeline_mode = #tpu.pipeline_mode<synchronous>, transform_indices = @transform_0, window_bounds = array<i64: 2, 6, 64>}, {pipeline_mode = #tpu.pipeline_mode<synchronous>, transform_indices = @transform_1, window_bounds = array<i64: 2, 22, 64>}, {pipeline_mode = #tpu.pipeline_mode<synchronous>, transform_indices = @transform_2, window_bounds = array<i64: 2, 6, 22>}, {pipeline_mode = #tpu.pipeline_mode<synchronous>, transform_indices = @transform_3, window_bounds = array<i64: 64, 64>}, {pipeline_mode = #tpu.pipeline_mode<synchronous>, transform_indices = @transform_4, window_bounds = array<i64: 1, 64>}, {pipeline_mode = #tpu.pipeline_mode<synchronous>, transform_indices = @transform_5, window_bounds = array<i64: 128, 64>}, {pipeline_mode = #tpu.pipeline_mode<synchronous>, transform_indices = @transform_6, window_bounds = array<i64: 1, 64>}, {pipeline_mode = #tpu.pipeline_mode<synchronous>, transform_indices = @transform_7, window_bounds = array<i64: 2, 6, 64>}, {pipeline_mode = #tpu.pipeline_mode<synchronous>, transform_indices = @transform_8, window_bounds = array<i64: 2, 6, 22>}]} {
    %c0 = arith.constant 0 : index
    %c0_0 = arith.constant 0 : index
    %c0_1 = arith.constant 0 : index
    %0 = vector.load %arg1[%c0, %c0_0, %c0_1] : memref<2x6x64xf32, #tpu.memory_space<vmem>>, vector<1x6x64xf32>
    %1 = vector.shape_cast %0 : vector<1x6x64xf32> to vector<6x64xf32>
    %c0_2 = arith.constant 0 : index
    %c0_3 = arith.constant 0 : index
    %2 = vector.load %arg4[%c0_2, %c0_3] : memref<64x64xf32, #tpu.memory_space<vmem>>, vector<64x64xf32>
    %cst = arith.constant dense<0.000000e+00> : vector<6x64xf32>
    %3 = tpu.matmul %1, %2, %cst {dimension_numbers = #tpu.dot_dimension_numbers<[1], [0], [0], [1], [0, 0, 1, 1], [], []>} : vector<6x64xf32>, vector<64x64xf32>, vector<6x64xf32> -> vector<6x64xf32>
    %c0_4 = arith.constant 0 : index
    %c0_5 = arith.constant 0 : index
    %4 = vector.load %arg5[%c0_4, %c0_5] : memref<1x64xf32, #tpu.memory_space<vmem>>, vector<1x64xf32>
    %5 = vector.broadcast %4 : vector<1x64xf32> to vector<6x64xf32>
    %6 = arith.addf %3, %5 : vector<6x64xf32>
    %7 = math.tanh %6 : vector<6x64xf32>
    %c0_6 = arith.constant 0 : index
    %c0_7 = arith.constant 0 : index
    %c0_8 = arith.constant 0 : index
    %8 = vector.load %arg2[%c0_6, %c0_7, %c0_8] : memref<2x22x64xf32, #tpu.memory_space<vmem>>, vector<1x22x64xf32>
    %9 = vector.shape_cast %8 : vector<1x22x64xf32> to vector<22x64xf32>
    %cst_9 = arith.constant dense<0.000000e+00> : vector<6x22xf32>
    %10 = tpu.matmul %7, %9, %cst_9 {dimension_numbers = #tpu.dot_dimension_numbers<[1], [1], [0], [0], [0, 0, 1, 0], [], []>} : vector<6x64xf32>, vector<22x64xf32>, vector<6x22xf32> -> vector<6x22xf32>
    %c0_10 = arith.constant 0 : index
    %c0_11 = arith.constant 0 : index
    %c0_12 = arith.constant 0 : index
    %11 = vector.load %arg3[%c0_10, %c0_11, %c0_12] : memref<2x6x22xf32, #tpu.memory_space<vmem>>, vector<1x6x22xf32>
    %12 = vector.shape_cast %11 : vector<1x6x22xf32> to vector<6x22xf32>
    %13 = arith.addf %10, %12 : vector<6x22xf32>
    %cst_13 = arith.constant dense<0xFF800000> : vector<6xf32>
    %14 = vector.multi_reduction <maximumf>, %13, %cst_13 [1] : vector<6x22xf32> to vector<6xf32>
    %15 = vector.shape_cast %14 : vector<6xf32> to vector<6x1xf32>
    %16 = vector.broadcast %15 : vector<6x1xf32> to vector<6x22xf32>
    %17 = arith.subf %13, %16 : vector<6x22xf32>
    %18 = math.exp %17 : vector<6x22xf32>
    %cst_14 = arith.constant dense<0.000000e+00> : vector<6xf32>
    %19 = vector.multi_reduction <add>, %18, %cst_14 [1] : vector<6x22xf32> to vector<6xf32>
    %20 = vector.shape_cast %19 : vector<6xf32> to vector<6x1xf32>
    %21 = tpu.reciprocal %20 {approx = true} : vector<6x1xf32> -> vector<6x1xf32>
    %22 = vector.broadcast %21 : vector<6x1xf32> to vector<6x22xf32>
    %23 = arith.mulf %18, %22 : vector<6x22xf32>
    %c0_15 = arith.constant 0 : index
    %c0_16 = arith.constant 0 : index
    %c0_17 = arith.constant 0 : index
    %24 = vector.load %arg9[%c0_15, %c0_16, %c0_17] : memref<2x6x22xf32, #tpu.memory_space<vmem>>, vector<1x6x22xf32>
    %25 = vector.shape_cast %24 : vector<1x6x22xf32> to vector<6x22xf32>
    %26 = vector.shape_cast %23 : vector<6x22xf32> to vector<1x6x22xf32>
    tpu.vector_store %arg9[%c0_15, %c0_16, %c0_17], %26 {strides = array<i32>} : memref<2x6x22xf32, #tpu.memory_space<vmem>>, vector<1x6x22xf32>,
    %cst_18 = arith.constant dense<0.000000e+00> : vector<6x64xf32>
    %27 = tpu.matmul %23, %9, %cst_18 {dimension_numbers = #tpu.dot_dimension_numbers<[1], [0], [0], [1], [0, 0, 1, 1], [], []>} : vector<6x22xf32>, vector<22x64xf32>, vector<6x64xf32> -> vector<6x64xf32>
    %c0_19 = arith.constant 0 : index
    %c0_20 = arith.constant 0 : index
    %28 = vector.load %arg6[%c0_19, %c0_20] : memref<128x64xf32, #tpu.memory_space<vmem>>, vector<64x64xf32>
    %cst_21 = arith.constant dense<0.000000e+00> : vector<6x64xf32>
    %29 = tpu.matmul %7, %28, %cst_21 {dimension_numbers = #tpu.dot_dimension_numbers<[1], [0], [0], [1], [0, 0, 1, 1], [], []>} : vector<6x64xf32>, vector<64x64xf32>, vector<6x64xf32> -> vector<6x64xf32>
    %c64 = arith.constant 64 : index
    %c0_22 = arith.constant 0 : index
    %30 = vector.load %arg6[%c64, %c0_22] : memref<128x64xf32, #tpu.memory_space<vmem>>, vector<64x64xf32>
    %cst_23 = arith.constant dense<0.000000e+00> : vector<6x64xf32>
    %31 = tpu.matmul %27, %30, %cst_23 {dimension_numbers = #tpu.dot_dimension_numbers<[1], [0], [0], [1], [0, 0, 1, 1], [], []>} : vector<6x64xf32>, vector<64x64xf32>, vector<6x64xf32> -> vector<6x64xf32>
    %32 = arith.addf %29, %31 : vector<6x64xf32>
    %c0_24 = arith.constant 0 : index
    %c0_25 = arith.constant 0 : index
    %33 = vector.load %arg7[%c0_24, %c0_25] : memref<1x64xf32, #tpu.memory_space<vmem>>, vector<1x64xf32>
    %34 = vector.broadcast %33 : vector<1x64xf32> to vector<6x64xf32>
    %35 = arith.addf %32, %34 : vector<6x64xf32>
    %36 = math.tanh %35 : vector<6x64xf32>
    %c0_26 = arith.constant 0 : index
    %c0_27 = arith.constant 0 : index
    %c0_28 = arith.constant 0 : index
    %37 = vector.load %arg8[%c0_26, %c0_27, %c0_28] : memref<2x6x64xf32, #tpu.memory_space<vmem>>, vector<1x6x64xf32>
    %38 = vector.shape_cast %37 : vector<1x6x64xf32> to vector<6x64xf32>
    %39 = vector.shape_cast %36 : vector<6x64xf32> to vector<1x6x64xf32>
    tpu.vector_store %arg8[%c0_26, %c0_27, %c0_28], %39 {strides = array<i32>} : memref<2x6x64xf32, #tpu.memory_space<vmem>>, vector<1x6x64xf32>,
    %c1 = arith.constant 1 : index
    %c0_29 = arith.constant 0 : index
    %c0_30 = arith.constant 0 : index
    %40 = vector.load %arg1[%c1, %c0_29, %c0_30] : memref<2x6x64xf32, #tpu.memory_space<vmem>>, vector<1x6x64xf32>
    %41 = vector.shape_cast %40 : vector<1x6x64xf32> to vector<6x64xf32>
    %c0_31 = arith.constant 0 : index
    %c0_32 = arith.constant 0 : index
    %42 = vector.load %arg4[%c0_31, %c0_32] : memref<64x64xf32, #tpu.memory_space<vmem>>, vector<64x64xf32>
    %cst_33 = arith.constant dense<0.000000e+00> : vector<6x64xf32>
    %43 = tpu.matmul %41, %42, %cst_33 {dimension_numbers = #tpu.dot_dimension_numbers<[1], [0], [0], [1], [0, 0, 1, 1], [], []>} : vector<6x64xf32>, vector<64x64xf32>, vector<6x64xf32> -> vector<6x64xf32>
    %c0_34 = arith.constant 0 : index
    %c0_35 = arith.constant 0 : index
    %44 = vector.load %arg5[%c0_34, %c0_35] : memref<1x64xf32, #tpu.memory_space<vmem>>, vector<1x64xf32>
    %45 = vector.broadcast %44 : vector<1x64xf32> to vector<6x64xf32>
    %46 = arith.addf %43, %45 : vector<6x64xf32>
    %47 = math.tanh %46 : vector<6x64xf32>
    %c1_36 = arith.constant 1 : index
    %c0_37 = arith.constant 0 : index
    %c0_38 = arith.constant 0 : index
    %48 = vector.load %arg2[%c1_36, %c0_37, %c0_38] : memref<2x22x64xf32, #tpu.memory_space<vmem>>, vector<1x22x64xf32>
    %49 = vector.shape_cast %48 : vector<1x22x64xf32> to vector<22x64xf32>
    %cst_39 = arith.constant dense<0.000000e+00> : vector<6x22xf32>
    %50 = tpu.matmul %47, %49, %cst_39 {dimension_numbers = #tpu.dot_dimension_numbers<[1], [1], [0], [0], [0, 0, 1, 0], [], []>} : vector<6x64xf32>, vector<22x64xf32>, vector<6x22xf32> -> vector<6x22xf32>
    %c1_40 = arith.constant 1 : index
    %c0_41 = arith.constant 0 : index
    %c0_42 = arith.constant 0 : index
    %51 = vector.load %arg3[%c1_40, %c0_41, %c0_42] : memref<2x6x22xf32, #tpu.memory_space<vmem>>, vector<1x6x22xf32>
    %52 = vector.shape_cast %51 : vector<1x6x22xf32> to vector<6x22xf32>
    %53 = arith.addf %50, %52 : vector<6x22xf32>
    %cst_43 = arith.constant dense<0xFF800000> : vector<6xf32>
    %54 = vector.multi_reduction <maximumf>, %53, %cst_43 [1] : vector<6x22xf32> to vector<6xf32>
    %55 = vector.shape_cast %54 : vector<6xf32> to vector<6x1xf32>
    %56 = vector.broadcast %55 : vector<6x1xf32> to vector<6x22xf32>
    %57 = arith.subf %53, %56 : vector<6x22xf32>
    %58 = math.exp %57 : vector<6x22xf32>
    %cst_44 = arith.constant dense<0.000000e+00> : vector<6xf32>
    %59 = vector.multi_reduction <add>, %58, %cst_44 [1] : vector<6x22xf32> to vector<6xf32>
    %60 = vector.shape_cast %59 : vector<6xf32> to vector<6x1xf32>
    %61 = tpu.reciprocal %60 {approx = true} : vector<6x1xf32> -> vector<6x1xf32>
    %62 = vector.broadcast %61 : vector<6x1xf32> to vector<6x22xf32>
    %63 = arith.mulf %58, %62 : vector<6x22xf32>
    %c1_45 = arith.constant 1 : index
    %c0_46 = arith.constant 0 : index
    %c0_47 = arith.constant 0 : index
    %64 = vector.load %arg9[%c1_45, %c0_46, %c0_47] : memref<2x6x22xf32, #tpu.memory_space<vmem>>, vector<1x6x22xf32>
    %65 = vector.shape_cast %64 : vector<1x6x22xf32> to vector<6x22xf32>
    %66 = vector.shape_cast %63 : vector<6x22xf32> to vector<1x6x22xf32>
    tpu.vector_store %arg9[%c1_45, %c0_46, %c0_47], %66 {strides = array<i32>} : memref<2x6x22xf32, #tpu.memory_space<vmem>>, vector<1x6x22xf32>,
    %cst_48 = arith.constant dense<0.000000e+00> : vector<6x64xf32>
    %67 = tpu.matmul %63, %49, %cst_48 {dimension_numbers = #tpu.dot_dimension_numbers<[1], [0], [0], [1], [0, 0, 1, 1], [], []>} : vector<6x22xf32>, vector<22x64xf32>, vector<6x64xf32> -> vector<6x64xf32>
    %c0_49 = arith.constant 0 : index
    %c0_50 = arith.constant 0 : index
    %68 = vector.load %arg6[%c0_49, %c0_50] : memref<128x64xf32, #tpu.memory_space<vmem>>, vector<64x64xf32>
    %cst_51 = arith.constant dense<0.000000e+00> : vector<6x64xf32>
    %69 = tpu.matmul %47, %68, %cst_51 {dimension_numbers = #tpu.dot_dimension_numbers<[1], [0], [0], [1], [0, 0, 1, 1], [], []>} : vector<6x64xf32>, vector<64x64xf32>, vector<6x64xf32> -> vector<6x64xf32>
    %c64_52 = arith.constant 64 : index
    %c0_53 = arith.constant 0 : index
    %70 = vector.load %arg6[%c64_52, %c0_53] : memref<128x64xf32, #tpu.memory_space<vmem>>, vector<64x64xf32>
    %cst_54 = arith.constant dense<0.000000e+00> : vector<6x64xf32>
    %71 = tpu.matmul %67, %70, %cst_54 {dimension_numbers = #tpu.dot_dimension_numbers<[1], [0], [0], [1], [0, 0, 1, 1], [], []>} : vector<6x64xf32>, vector<64x64xf32>, vector<6x64xf32> -> vector<6x64xf32>
    %72 = arith.addf %69, %71 : vector<6x64xf32>
    %c0_55 = arith.constant 0 : index
    %c0_56 = arith.constant 0 : index
    %73 = vector.load %arg7[%c0_55, %c0_56] : memref<1x64xf32, #tpu.memory_space<vmem>>, vector<1x64xf32>
    %74 = vector.broadcast %73 : vector<1x64xf32> to vector<6x64xf32>
    %75 = arith.addf %72, %74 : vector<6x64xf32>
    %76 = math.tanh %75 : vector<6x64xf32>
    %c1_57 = arith.constant 1 : index
    %c0_58 = arith.constant 0 : index
    %c0_59 = arith.constant 0 : index
    %77 = vector.load %arg8[%c1_57, %c0_58, %c0_59] : memref<2x6x64xf32, #tpu.memory_space<vmem>>, vector<1x6x64xf32>
    %78 = vector.shape_cast %77 : vector<1x6x64xf32> to vector<6x64xf32>
    %79 = vector.shape_cast %76 : vector<6x64xf32> to vector<1x6x64xf32>
    tpu.vector_store %arg8[%c1_57, %c0_58, %c0_59], %79 {strides = array<i32>} : memref<2x6x64xf32, #tpu.memory_space<vmem>>, vector<1x6x64xf32>,
    return
  }
  func.func @transform_0(%arg0: i32) -> (i32, i32, i32) {
    %c0_i32 = arith.constant 0 : i32
    %c0_i32_0 = arith.constant 0 : i32
    %c0_i32_1 = arith.constant 0 : i32
    %c0_i32_2 = arith.constant 0 : i32
    return %c0_i32, %c0_i32_0, %c0_i32_1 : i32, i32, i32
  }
  func.func @transform_1(%arg0: i32) -> (i32, i32, i32) {
    %c0_i32 = arith.constant 0 : i32
    %c0_i32_0 = arith.constant 0 : i32
    %c0_i32_1 = arith.constant 0 : i32
    %c0_i32_2 = arith.constant 0 : i32
    return %c0_i32, %c0_i32_0, %c0_i32_1 : i32, i32, i32
  }
  func.func @transform_2(%arg0: i32) -> (i32, i32, i32) {
    %c0_i32 = arith.constant 0 : i32
    %c0_i32_0 = arith.constant 0 : i32
    %c0_i32_1 = arith.constant 0 : i32
    %c0_i32_2 = arith.constant 0 : i32
    return %c0_i32, %c0_i32_0, %c0_i32_1 : i32, i32, i32
  }
  func.func @transform_3(%arg0: i32) -> (i32, i32) {
    %c0_i32 = arith.constant 0 : i32
    %c0_i32_0 = arith.constant 0 : i32
    %c0_i32_1 = arith.constant 0 : i32
    return %c0_i32, %c0_i32_0 : i32, i32
  }
  func.func @transform_4(%arg0: i32) -> (i32, i32) {
    %c0_i32 = arith.constant 0 : i32
    %c0_i32_0 = arith.constant 0 : i32
    %c0_i32_1 = arith.constant 0 : i32
    return %c0_i32, %c0_i32_0 : i32, i32
  }
  func.func @transform_5(%arg0: i32) -> (i32, i32) {
    %c0_i32 = arith.constant 0 : i32
    %c0_i32_0 = arith.constant 0 : i32
    %c0_i32_1 = arith.constant 0 : i32
    return %c0_i32, %c0_i32_0 : i32, i32
  }
  func.func @transform_6(%arg0: i32) -> (i32, i32) {
    %c0_i32 = arith.constant 0 : i32
    %c0_i32_0 = arith.constant 0 : i32
    %c0_i32_1 = arith.constant 0 : i32
    return %c0_i32, %c0_i32_0 : i32, i32
  }
  func.func @transform_7(%arg0: i32) -> (i32, i32, i32) {
    %c0_i32 = arith.constant 0 : i32
    %c0_i32_0 = arith.constant 0 : i32
    %c0_i32_1 = arith.constant 0 : i32
    %c0_i32_2 = arith.constant 0 : i32
    return %c0_i32, %c0_i32_0, %c0_i32_1 : i32, i32, i32
  }
  func.func @transform_8(%arg0: i32) -> (i32, i32, i32) {
    %c0_i32 = arith.constant 0 : i32
    %c0_i32_0 = arith.constant 0 : i32
    %c0_i32_1 = arith.constant 0 : i32
    %c0_i32_2 = arith.constant 0 : i32
    return %c0_i32, %c0_i32_0, %c0_i32_1 : i32, i32, i32
  }
}

</mosaic_0001>

<llo_original>
// kernel: nmt_forward.6
$region0: #{nmt_forward.6}
  #allocation0 [shape = 'u32[]', space=smem, size = 0x4, offset = 0x4, fixed_abs, tag = 'smem constant byte address 0x4 - core index']
  #allocation1 [shape = 'u32[72,128]{1,0:T(1,128)}', space=vmem, size = 0x9000, scoped, tag = 'internal scratch']
  #allocation2 [shape = 'f32[18,128]{1,0:T(8,128)}', space=vmem, size = 0x3000, scoped, tag = 'scratch operand']
  %s0 = inlined_call_operand.vmem [shape: f32[18,64], index: 0, kind: input, shape index: {}]
  %s1 = inlined_call_operand.hbm [shape: f32[64,128], index: 1, kind: input, shape index: {}]
  %s2 = inlined_call_operand.hbm [shape: f32[1,128], index: 2, kind: input, shape index: {}]
  %s3 = inlined_call_operand.vmem [shape: f32[18,128], index: 3, kind: output, shape index: {}]
  %s4 = sld [smem:[#allocation0]]
  $region38: #{nmt_forward.6} parent=0
    _
  %s6 = ssub.s32 1, %s4
  %s7 = scalar_select 0, %s6, %s4
  $region1: #{nmt_forward.6} parent=0
    #allocation3 [shape = 'u8[32768]{0}', space=vmem, size = 0x8000, scoped, tag = 'input window, operand 1, single buffered']
    #allocation4 [shape = 's32[1]{0}', space=sflag, size = 0x4, scoped, tag = 'scoped memory for nmt_forward.6']
    #allocation5 [shape = 'u8[512]{0}', space=vmem, size = 0x400, scoped, tag = 'input window, operand 2, single buffered']
    #allocation6 [shape = 's32[1]{0}', space=sflag, size = 0x4, scoped, tag = 'scoped memory for nmt_forward.6']
    %8 = vsyncpa [#allocation4], 0
    %9 = vsyncpa [#allocation6], 0
    // Predicated region
    $region2: #{nmt_forward.6} parent=1 // pred_check
      _
    $region3: #{nmt_forward.6} parent=1 // pred_check_branch
      %11 = sbr.rel (0) target = $region5
    $region4: #{nmt_forward.6} parent=1 // pred_region
      _
    $region5: #{nmt_forward.6} parent=1 // pred_fallthru
      _
    // Predicated region
    $region6: #{nmt_forward.6} parent=1 // pred_check
      _
    $region7: #{nmt_forward.6} parent=1 // pred_check_branch
      %13 = sbr.rel (0) target = $region9
    $region8: #{nmt_forward.6} parent=1 // pred_region
      %15 = vsyncadd [#allocation4], 0
      %s16 = sshll.u32 %s1, 4
      %s17 = int_to_ptr.hbm [resolvable:$true] %s16
      %s18 = sshll.u32 [#allocation3], 4
      %s19 = int_to_ptr.vmem [resolvable:$true] %s18
      %24 = dma.hbm_to_vmem [thread:$0]  %s17, 1024, %s19, [#allocation4], 128, 128, 8
    $region9: #{nmt_forward.6} parent=1 // pred_fallthru
      _
    // Predicated region
    $region10: #{nmt_forward.6} parent=1 // pred_check
      _
    $region11: #{nmt_forward.6} parent=1 // pred_check_branch
      %26 = sbr.rel (0) target = $region13
    $region12: #{nmt_forward.6} parent=1 // pred_region
      %28 = vsyncadd [#allocation6], 0
      %s30 = sshll.u32 %s2, 4
      %s31 = int_to_ptr.hbm [resolvable:$true] %s30
      %s32 = sshll.u32 [#allocation5], 4
      %s33 = int_to_ptr.vmem [resolvable:$true] %s32
      %35 = dma.hbm_to_vmem [thread:$0]  %s31, 16, %s33, [#allocation6]
    $region13: #{nmt_forward.6} parent=1 // pred_fallthru
      _
    // Predicated region
    $region14: #{nmt_forward.6} parent=1 // pred_check
      _
    $region15: #{nmt_forward.6} parent=1 // pred_check_branch
      %37 = sbr.rel (0) target = $region17
    $region16: #{nmt_forward.6} parent=1 // pred_region
      %39 = dma.done [#allocation4], 1024
    $region17: #{nmt_forward.6} parent=1 // pred_fallthru
      _
    // Predicated region
    $region18: #{nmt_forward.6} parent=1 // pred_check
      _
    $region19: #{nmt_forward.6} parent=1 // pred_check_branch
      %41 = sbr.rel (0) target = $region21
    $region20: #{nmt_forward.6} parent=1 // pred_region
      %43 = dma.done [#allocation6], 16
    $region21: #{nmt_forward.6} parent=1 // pred_fallthru
      _
    %p44 = scmp.eq.s32.totalorder 0, 0
    // Predicated region
    $region22: #{nmt_forward.6} parent=1 // pred_check
      %p45 = pneg %p44
    $region23: #{nmt_forward.6} parent=1 // pred_check_branch
      %47 = sbr.rel (%p45) target = $region25
    $region24: #{nmt_forward.6} parent=1 // pred_region
      %48 = vst [vmem:[#allocation2] sm:$0xff] 0.0
      %49 = vst [vmem:[#allocation2 + $0x8] sm:$0xff] 0.0
      %50 = vst [vmem:[#allocation2 + $0x10] sm:$0x3] 0.0
    $region25: #{nmt_forward.6} parent=1 // pred_fallthru
      _
    %v51 = vld [vmem:[#allocation2] sm:$0xff]
    %v52 = vld [vmem:[#allocation2 + $0x8] sm:$0xff]
    %v53 = vld [vmem:[#allocation2 + $0x10] sm:$0x3]
    %v54 = vld [vmem:[%s0] sm:$0xff]
    %v55 = vld [vmem:[%s0 + $0x8] sm:$0xff]
    %v56 = vld [vmem:[%s0 + $0x10] sm:$0x3]
    %v57 = vld [vmem:[#allocation3] sm:$0xff]
    %v58 = vld [vmem:[#allocation3 + $0x8] sm:$0xff]
    %v59 = vld [vmem:[#allocation3 + $0x10] sm:$0xff]
    %v60 = vld [vmem:[#allocation3 + $0x18] sm:$0xff]
    %v61 = vld [vmem:[#allocation3 + $0x20] sm:$0xff]
    %v62 = vld [vmem:[#allocation3 + $0x28] sm:$0xff]
    %v63 = vld [vmem:[#allocation3 + $0x30] sm:$0xff]
    %v64 = vld [vmem:[#allocation3 + $0x38] sm:$0xff]
    %vm65 = vcmask 523264
    %v67 = vsel %vm65, %v54, 0
    %v70 = vsel %vm65, %v55, 0
    %v73 = vsel %vm65, %v56, 0
    %75 = vmatpush.msra.mxu0 0.0
    %76 = vmatpush.msra.mxu0 0.0
    %77 = vmatpush.msra.mxu0 0.0
    %78 = vmatpush.msra.mxu0 0.0
    %79 = vmatpush.msra.mxu0 0.0
    %80 = vmatpush.msra.mxu0 0.0
    %81 = vmatpush.msra.mxu0 0.0
    %82 = vmatpush.msra.mxu0 0.0
    %83 = vmatpush.msra.mxu0 %v64
    %84 = vmatpush.msra.mxu0 %v63
    %85 = vmatpush.msra.mxu0 %v62
    %86 = vmatpush.msra.mxu0 %v61
    %87 = vmatpush.msra.mxu0 %v60
    %88 = vmatpush.msra.mxu0 %v59
    %89 = vmatpush.msra.mxu0 %v58
    %90 = vmatpush.msra.mxu0 %v57
    %91 = vmatmul.f32.gmra.mxu0 %v67
    %v92 = vpop.f32.mrf.mxu0
    %v93 = vadd.f32 0.0, %v92
    %94 = vmatmul.f32.gmra.mxu0 %v70
    %v95 = vpop.f32.mrf.mxu0
    %v96 = vadd.f32 0.0, %v95
    %97 = vmatmul.f32.gmra.mxu0 %v73
    %v98 = vpop.f32.mrf.mxu0
    %v99 = vadd.f32 0.0, %v98
    %100 = vdwg.mxu0
    %v101 = vadd.f32 %v51, %v93
    %v102 = vadd.f32 %v52, %v96
    %v103 = vadd.f32 %v53, %v99
    %104 = vst [vmem:[#allocation2] sm:$0xff] %v101
    %105 = vst [vmem:[#allocation2 + $0x8] sm:$0xff] %v102
    %106 = vst [vmem:[#allocation2 + $0x10] sm:$0x3] %v103
    // Predicated region
    $region26: #{nmt_forward.6} parent=1 // pred_check
      %p107 = pneg %p44
    $region27: #{nmt_forward.6} parent=1 // pred_check_branch
      %109 = sbr.rel (%p107) target = $region29
    $region28: #{nmt_forward.6} parent=1 // pred_region
      %v110 = vld [vmem:[#allocation2] sm:$0xff]
      %v111 = vld [vmem:[#allocation2 + $0x8] sm:$0xff]
      %v112 = vld [vmem:[#allocation2 + $0x10] sm:$0x3]
      %v113 = vld [vmem:[#allocation5] sm:$0x1]
      %v115 = vperm.slane %v113, 0
      %v117 = vadd.f32 %v110, %v115
      %v118 = vadd.f32 %v111, %v115
      %v119 = vadd.f32 %v112, %v115
      %v120 = vtanh.pop %v117
      %v121 = vtanh.pop %v118
      %v122 = vtanh.pop %v119
      %123 = vst [vmem:[%s3] sm:$0xff] %v120
      %124 = vst [vmem:[%s3 + $0x8] sm:$0xff] %v121
      %125 = vst [vmem:[%s3 + $0x10] sm:$0x3] %v122
    $region29: #{nmt_forward.6} parent=1 // pred_fallthru
      _
    // Predicated region
    $region30: #{nmt_forward.6} parent=1 // pred_check
      _
    $region31: #{nmt_forward.6} parent=1 // pred_check_branch
      %127 = sbr.rel (0) target = $region33
    $region32: #{nmt_forward.6} parent=1 // pred_region
      _
    $region33: #{nmt_forward.6} parent=1 // pred_fallthru
      _
    // Predicated region
    $region34: #{nmt_forward.6} parent=1 // pred_check
      _
    $region35: #{nmt_forward.6} parent=1 // pred_check_branch
      %129 = sbr.rel (0) target = $region37
    $region36: #{nmt_forward.6} parent=1 // pred_region
      _
    $region37: #{nmt_forward.6} parent=1 // pred_fallthru
      _
    %130 = vsyncpa [#allocation4], 1
    %131 = vsyncpa [#allocation6], 1

// kernel: nmt_forward.7
$region0: #{nmt_forward.7}
  #allocation0 [shape = 'u32[]', space=smem, size = 0x4, offset = 0x4, fixed_abs, tag = 'smem constant byte address 0x4 - core index']
  #allocation1 [shape = 'u32[72,128]{1,0:T(1,128)}', space=vmem, size = 0x9000, scoped, tag = 'internal scratch']
  %s0 = inlined_call_operand.hbm [shape: f32[10,9], index: 0, kind: input, shape index: {}]
  %s1 = inlined_call_operand.vmem [shape: f32[9,256], index: 1, kind: input, shape index: {}]
  %s2 = inlined_call_operand.vmem [shape: f32[10,256], index: 2, kind: output, shape index: {}]
  %s3 = sld [smem:[#allocation0]]
  $region22: #{nmt_forward.7} parent=0
    _
  %s5 = ssub.s32 1, %s3
  %s6 = scalar_select 0, %s5, %s3
  $region1: #{nmt_forward.7} parent=0
    #allocation2 [shape = 'u8[8192]{0}', space=vmem, size = 0x2000, scoped, tag = 'input window, operand 0, single buffered']
    #allocation3 [shape = 's32[1]{0}', space=sflag, size = 0x4, scoped, tag = 'scoped memory for nmt_forward.7']
    %7 = vsyncpa [#allocation3], 0
    // Predicated region
    $region2: #{nmt_forward.7} parent=1 // pred_check
      _
    $region3: #{nmt_forward.7} parent=1 // pred_check_branch
      %9 = sbr.rel (0) target = $region5
    $region4: #{nmt_forward.7} parent=1 // pred_region
      %11 = vsyncadd [#allocation3], 0
      %s12 = sshll.u32 %s0, 4
      %s13 = int_to_ptr.hbm [resolvable:$true] %s12
      %s14 = sshll.u32 [#allocation2], 4
      %s15 = int_to_ptr.vmem [resolvable:$true] %s14
      %20 = dma.hbm_to_vmem [thread:$0]  %s13, 256, %s15, [#allocation3], 128, 128, 8
    $region5: #{nmt_forward.7} parent=1 // pred_fallthru
      _
    // Predicated region
    $region6: #{nmt_forward.7} parent=1 // pred_check
      _
    $region7: #{nmt_forward.7} parent=1 // pred_check_branch
      %22 = sbr.rel (0) target = $region9
    $region8: #{nmt_forward.7} parent=1 // pred_region
      _
    $region9: #{nmt_forward.7} parent=1 // pred_fallthru
      _
    // Predicated region
    $region10: #{nmt_forward.7} parent=1 // pred_check
      _
    $region11: #{nmt_forward.7} parent=1 // pred_check_branch
      %24 = sbr.rel (0) target = $region13
    $region12: #{nmt_forward.7} parent=1 // pred_region
      %26 = dma.done [#allocation3], 256
    $region13: #{nmt_forward.7} parent=1 // pred_fallthru
      _
    %v27 = vld [vmem:[#allocation2] sm:$0xff]
    %v28 = vld [vmem:[#allocation2 + $0x8] sm:$0x3]
    %v29 = vld [vmem:[%s1] sm:$0xff]
    %v30 = vld [vmem:[%s1 + $0x8] sm:$0xff]
    %v31 = vld [vmem:[%s1 + $0x10] sm:$0x1]
    %v32 = vld [vmem:[%s1 + $0x18] sm:$0x1]
    %vm33 = vcmask 72704
    %v35 = vsel %vm33, %v27, 0
    %v38 = vsel %vm33, %v28, 0
    %vm40 = vcmask 1040384
    %v42 = vsel %vm40, %v31, 0
    %v45 = vsel %vm40, %v32, 0
    %47 = vmatpush.msra.mxu0 0.0
    %48 = vmatpush.msra.mxu0 0.0
    %49 = vmatpush.msra.mxu0 0.0
    %50 = vmatpush.msra.mxu0 0.0
    %51 = vmatpush.msra.mxu0 0.0
    %52 = vmatpush.msra.mxu0 0.0
    %53 = vmatpush.msra.mxu0 0.0
    %54 = vmatpush.msra.mxu0 0.0
    %55 = vmatpush.msra.mxu0 0.0
    %56 = vmatpush.msra.mxu0 0.0
    %57 = vmatpush.msra.mxu0 0.0
    %58 = vmatpush.msra.mxu0 0.0
    %59 = vmatpush.msra.mxu0 0.0
    %60 = vmatpush.msra.mxu0 0.0
    %61 = vmatpush.msra.mxu0 %v42
    %62 = vmatpush.msra.mxu0 %v29
    %63 = vmatmul.f32.gmra.mxu0 %v35
    %v64 = vpop.f32.mrf.mxu0
    %v65 = vadd.f32 0.0, %v64
    %66 = vmatmul.f32.gmra.mxu0 %v38
    %v67 = vpop.f32.mrf.mxu0
    %v68 = vadd.f32 0.0, %v67
    %69 = vdwg.mxu0
    %70 = vmatpush.msra.mxu0 0.0
    %71 = vmatpush.msra.mxu0 0.0
    %72 = vmatpush.msra.mxu0 0.0
    %73 = vmatpush.msra.mxu0 0.0
    %74 = vmatpush.msra.mxu0 0.0
    %75 = vmatpush.msra.mxu0 0.0
    %76 = vmatpush.msra.mxu0 0.0
    %77 = vmatpush.msra.mxu0 0.0
    %78 = vmatpush.msra.mxu0 0.0
    %79 = vmatpush.msra.mxu0 0.0
    %80 = vmatpush.msra.mxu0 0.0
    %81 = vmatpush.msra.mxu0 0.0
    %82 = vmatpush.msra.mxu0 0.0
    %83 = vmatpush.msra.mxu0 0.0
    %84 = vmatpush.msra.mxu0 %v45
    %85 = vmatpush.msra.mxu0 %v30
    %86 = vmatmul.f32.gmra.mxu0 %v35
    %v87 = vpop.f32.mrf.mxu0
    %v88 = vadd.f32 0.0, %v87
    %89 = vmatmul.f32.gmra.mxu0 %v38
    %v90 = vpop.f32.mrf.mxu0
    %v91 = vadd.f32 0.0, %v90
    %92 = vdwg.mxu0
    %93 = vst [vmem:[%s2] sm:$0xff] %v65
    %94 = vst [vmem:[%s2 + $0x8] sm:$0xff] %v88
    %95 = vst [vmem:[%s2 + $0x10] sm:$0x3] %v68
    %96 = vst [vmem:[%s2 + $0x18] sm:$0x3] %v91
    // Predicated region
    $region14: #{nmt_forward.7} parent=1 // pred_check
      _
    $region15: #{nmt_forward.7} parent=1 // pred_check_branch
      %98 = sbr.rel (0) target = $region17
    $region16: #{nmt_forward.7} parent=1 // pred_region
      _
    $region17: #{nmt_forward.7} parent=1 // pred_fallthru
      _
    // Predicated region
    $region18: #{nmt_forward.7} parent=1 // pred_check
      _
    $region19: #{nmt_forward.7} parent=1 // pred_check_branch
      %100 = sbr.rel (0) target = $region21
    $region20: #{nmt_forward.7} parent=1 // pred_region
      _
    $region21: #{nmt_forward.7} parent=1 // pred_fallthru
      _
    %101 = vsyncpa [#allocation3], 1

// kernel: nmt_forward.5
$region0: #{nmt_forward.5}
  #allocation0 [shape = 'u32[]', space=smem, size = 0x4, offset = 0x4, fixed_abs, tag = 'smem constant byte address 0x4 - core index']
  #allocation1 [shape = 'u32[72,128]{1,0:T(1,128)}', space=vmem, size = 0x9000, scoped, tag = 'internal scratch']
  #allocation2 [shape = 'f32[24,128]{1,0:T(8,128)}', space=vmem, size = 0x3000, scoped, tag = 'scratch operand']
  %s0 = inlined_call_operand.vmem [shape: f32[24,64], index: 0, kind: input, shape index: {}]
  %s1 = inlined_call_operand.hbm [shape: f32[64,128], index: 1, kind: input, shape index: {}]
  %s2 = inlined_call_operand.hbm [shape: f32[1,128], index: 2, kind: input, shape index: {}]
  %s3 = inlined_call_operand.vmem [shape: f32[24,128], index: 3, kind: output, shape index: {}]
  %s4 = sld [smem:[#allocation0]]
  $region38: #{nmt_forward.5} parent=0
    _
  %s6 = ssub.s32 1, %s4
  %s7 = scalar_select 0, %s6, %s4
  $region1: #{nmt_forward.5} parent=0
    #allocation3 [shape = 'u8[32768]{0}', space=vmem, size = 0x8000, scoped, tag = 'input window, operand 1, single buffered']
    #allocation4 [shape = 's32[1]{0}', space=sflag, size = 0x4, scoped, tag = 'scoped memory for nmt_forward.5']
    #allocation5 [shape = 'u8[512]{0}', space=vmem, size = 0x400, scoped, tag = 'input window, operand 2, single buffered']
    #allocation6 [shape = 's32[1]{0}', space=sflag, size = 0x4, scoped, tag = 'scoped memory for nmt_forward.5']
    %8 = vsyncpa [#allocation4], 0
    %9 = vsyncpa [#allocation6], 0
    // Predicated region
    $region2: #{nmt_forward.5} parent=1 // pred_check
      _
    $region3: #{nmt_forward.5} parent=1 // pred_check_branch
      %11 = sbr.rel (0) target = $region5
    $region4: #{nmt_forward.5} parent=1 // pred_region
      _
    $region5: #{nmt_forward.5} parent=1 // pred_fallthru
      _
    // Predicated region
    $region6: #{nmt_forward.5} parent=1 // pred_check
      _
    $region7: #{nmt_forward.5} parent=1 // pred_check_branch
      %13 = sbr.rel (0) target = $region9
    $region8: #{nmt_forward.5} parent=1 // pred_region
      %15 = vsyncadd [#allocation4], 0
      %s16 = sshll.u32 %s1, 4
      %s17 = int_to_ptr.hbm [resolvable:$true] %s16
      %s18 = sshll.u32 [#allocation3], 4
      %s19 = int_to_ptr.vmem [resolvable:$true] %s18
      %24 = dma.hbm_to_vmem [thread:$0]  %s17, 1024, %s19, [#allocation4], 128, 128, 8
    $region9: #{nmt_forward.5} parent=1 // pred_fallthru
      _
    // Predicated region
    $region10: #{nmt_forward.5} parent=1 // pred_check
      _
    $region11: #{nmt_forward.5} parent=1 // pred_check_branch
      %26 = sbr.rel (0) target = $region13
    $region12: #{nmt_forward.5} parent=1 // pred_region
      %28 = vsyncadd [#allocation6], 0
      %s30 = sshll.u32 %s2, 4
      %s31 = int_to_ptr.hbm [resolvable:$true] %s30
      %s32 = sshll.u32 [#allocation5], 4
      %s33 = int_to_ptr.vmem [resolvable:$true] %s32
      %35 = dma.hbm_to_vmem [thread:$0]  %s31, 16, %s33, [#allocation6]
    $region13: #{nmt_forward.5} parent=1 // pred_fallthru
      _
    // Predicated region
    $region14: #{nmt_forward.5} parent=1 // pred_check
      _
    $region15: #{nmt_forward.5} parent=1 // pred_check_branch
      %37 = sbr.rel (0) target = $region17
    $region16: #{nmt_forward.5} parent=1 // pred_region
      %39 = dma.done [#allocation4], 1024
    $region17: #{nmt_forward.5} parent=1 // pred_fallthru
      _
    // Predicated region
    $region18: #{nmt_forward.5} parent=1 // pred_check
      _
    $region19: #{nmt_forward.5} parent=1 // pred_check_branch
      %41 = sbr.rel (0) target = $region21
    $region20: #{nmt_forward.5} parent=1 // pred_region
      %43 = dma.done [#allocation6], 16
    $region21: #{nmt_forward.5} parent=1 // pred_fallthru
      _
    %p44 = scmp.eq.s32.totalorder 0, 0
    // Predicated region
    $region22: #{nmt_forward.5} parent=1 // pred_check
      %p45 = pneg %p44
    $region23: #{nmt_forward.5} parent=1 // pred_check_branch
      %47 = sbr.rel (%p45) target = $region25
    $region24: #{nmt_forward.5} parent=1 // pred_region
      %48 = vst [vmem:[#allocation2] sm:$0xff] 0.0
      %49 = vst [vmem:[#allocation2 + $0x8] sm:$0xff] 0.0
      %50 = vst [vmem:[#allocation2 + $0x10] sm:$0xff] 0.0
    $region25: #{nmt_forward.5} parent=1 // pred_fallthru
      _
    %v51 = vld [vmem:[#allocation2] sm:$0xff]
    %v52 = vld [vmem:[#allocation2 + $0x8] sm:$0xff]
    %v53 = vld [vmem:[#allocation2 + $0x10] sm:$0xff]
    %v54 = vld [vmem:[%s0] sm:$0xff]
    %v55 = vld [vmem:[%s0 + $0x8] sm:$0xff]
    %v56 = vld [vmem:[%s0 + $0x10] sm:$0xff]
    %v57 = vld [vmem:[#allocation3] sm:$0xff]
    %v58 = vld [vmem:[#allocation3 + $0x8] sm:$0xff]
    %v59 = vld [vmem:[#allocation3 + $0x10] sm:$0xff]
    %v60 = vld [vmem:[#allocation3 + $0x18] sm:$0xff]
    %v61 = vld [vmem:[#allocation3 + $0x20] sm:$0xff]
    %v62 = vld [vmem:[#allocation3 + $0x28] sm:$0xff]
    %v63 = vld [vmem:[#allocation3 + $0x30] sm:$0xff]
    %v64 = vld [vmem:[#allocation3 + $0x38] sm:$0xff]
    %vm65 = vcmask 523264
    %v67 = vsel %vm65, %v54, 0
    %v70 = vsel %vm65, %v55, 0
    %v73 = vsel %vm65, %v56, 0
    %75 = vmatpush.msra.mxu0 0.0
    %76 = vmatpush.msra.mxu0 0.0
    %77 = vmatpush.msra.mxu0 0.0
    %78 = vmatpush.msra.mxu0 0.0
    %79 = vmatpush.msra.mxu0 0.0
    %80 = vmatpush.msra.mxu0 0.0
    %81 = vmatpush.msra.mxu0 0.0
    %82 = vmatpush.msra.mxu0 0.0
    %83 = vmatpush.msra.mxu0 %v64
    %84 = vmatpush.msra.mxu0 %v63
    %85 = vmatpush.msra.mxu0 %v62
    %86 = vmatpush.msra.mxu0 %v61
    %87 = vmatpush.msra.mxu0 %v60
    %88 = vmatpush.msra.mxu0 %v59
    %89 = vmatpush.msra.mxu0 %v58
    %90 = vmatpush.msra.mxu0 %v57
    %91 = vmatmul.f32.gmra.mxu0 %v67
    %v92 = vpop.f32.mrf.mxu0
    %v93 = vadd.f32 0.0, %v92
    %94 = vmatmul.f32.gmra.mxu0 %v70
    %v95 = vpop.f32.mrf.mxu0
    %v96 = vadd.f32 0.0, %v95
    %97 = vmatmul.f32.gmra.mxu0 %v73
    %v98 = vpop.f32.mrf.mxu0
    %v99 = vadd.f32 0.0, %v98
    %100 = vdwg.mxu0
    %v101 = vadd.f32 %v51, %v93
    %v102 = vadd.f32 %v52, %v96
    %v103 = vadd.f32 %v53, %v99
    %104 = vst [vmem:[#allocation2] sm:$0xff] %v101
    %105 = vst [vmem:[#allocation2 + $0x8] sm:$0xff] %v102
    %106 = vst [vmem:[#allocation2 + $0x10] sm:$0xff] %v103
    // Predicated region
    $region26: #{nmt_forward.5} parent=1 // pred_check
      %p107 = pneg %p44
    $region27: #{nmt_forward.5} parent=1 // pred_check_branch
      %109 = sbr.rel (%p107) target = $region29
    $region28: #{nmt_forward.5} parent=1 // pred_region
      %v110 = vld [vmem:[#allocation2] sm:$0xff]
      %v111 = vld [vmem:[#allocation2 + $0x8] sm:$0xff]
      %v112 = vld [vmem:[#allocation2 + $0x10] sm:$0xff]
      %v113 = vld [vmem:[#allocation5] sm:$0x1]
      %v115 = vperm.slane %v113, 0
      %v117 = vadd.f32 %v110, %v115
      %v118 = vadd.f32 %v111, %v115
      %v119 = vadd.f32 %v112, %v115
      %v120 = vtanh.pop %v117
      %v121 = vtanh.pop %v118
      %v122 = vtanh.pop %v119
      %123 = vst [vmem:[%s3] sm:$0xff] %v120
      %124 = vst [vmem:[%s3 + $0x8] sm:$0xff] %v121
      %125 = vst [vmem:[%s3 + $0x10] sm:$0xff] %v122
    $region29: #{nmt_forward.5} parent=1 // pred_fallthru
      _
    // Predicated region
    $region30: #{nmt_forward.5} parent=1 // pred_check
      _
    $region31: #{nmt_forward.5} parent=1 // pred_check_branch
      %127 = sbr.rel (0) target = $region33
    $region32: #{nmt_forward.5} parent=1 // pred_region
      _
    $region33: #{nmt_forward.5} parent=1 // pred_fallthru
      _
    // Predicated region
    $region34: #{nmt_forward.5} parent=1 // pred_check
      _
    $region35: #{nmt_forward.5} parent=1 // pred_check_branch
      %129 = sbr.rel (0) target = $region37
    $region36: #{nmt_forward.5} parent=1 // pred_region
      _
    $region37: #{nmt_forward.5} parent=1 // pred_fallthru
      _
    %130 = vsyncpa [#allocation4], 1
    %131 = vsyncpa [#allocation6], 1

// kernel: nmt_forward.8
$region0: #{nmt_forward.8}
  #allocation0 [shape = 'u32[]', space=smem, size = 0x4, offset = 0x4, fixed_abs, tag = 'smem constant byte address 0x4 - core index']
  #allocation1 [shape = 'u32[72,128]{1,0:T(1,128)}', space=vmem, size = 0x9000, scoped, tag = 'internal scratch']
  #allocation2 [shape = 'f32[4,128]{1,0:T(4,128)}', space=vmem, size = 0x800, scoped, tag = 'scratch operand']
  %s0 = inlined_call_operand.vmem [shape: f32[4,640], index: 0, kind: input, shape index: {}]
  %s1 = inlined_call_operand.hbm [shape: f32[640,640], index: 1, kind: input, shape index: {}]
  %s2 = inlined_call_operand.vmem [shape: f32[1,640], index: 2, kind: input, shape index: {}]
  %s3 = inlined_call_operand.vmem [shape: f32[4,640], index: 3, kind: output, shape index: {}]
  %s4 = sld [smem:[#allocation0]]
  $region57: #{nmt_forward.8} parent=0
    _
  %s6 = ssub.s32 1, %s4
  %s7 = scalar_select 0, %s6, %s4
  $region1: #{nmt_forward.8} parent=0
    #allocation3 [shape = 'u8[131072]{0}', space=vmem, size = 0x20000, scoped, tag = 'input window, operand 1']
    #allocation4 [shape = 's32[2]{0}', space=sflag, size = 0x8, scoped, tag = 'scoped memory for nmt_forward.8']
    %8 = vsyncpa [#allocation4], 0
    %s9 = scalar_lea.sflag [#allocation4], 1
    %10 = vsyncpa %s9, 0
    loop: start=0, step=1, limit=27
    $region2: #{nmt_forward.8} parent=1 // loop_pre_header
      _
    $region3: #{nmt_forward.8} parent=1 // loop_header
      %s12 = sphi 0, %s16
      %p13 = scmp.ge.s32.totalorder %s12, 27
      %s19 = sphi 0, %s31
      %s20 = sphi 0, %s27
      %s21 = sphi 0, %s19
      %s22 = sphi 0, %s20
      %s23 = sphi 0, %s21
      %s24 = sphi 0, %s22
      %s34 = sphi 0, %s36
      %s37 = sphi 0, %s34
      %s38 = sphi 0, %s37
      %s54 = sphi 0, %s38
      %s62 = sphi 0, %s64
      %s65 = sphi 0, %s62
      %s66 = sphi 0, %s65
      %s82 = sphi 0, %s66
      %s88 = sphi 0, %s90
      %s91 = sphi 0, %s88
      %s92 = sphi 0, %s91
      %s108 = sphi 0, %s92
      %s114 = sphi 0, %s116
      %s117 = sphi 0, %s114
      %s118 = sphi 0, %s117
      %s134 = sphi 0, %s118
    $region4: #{nmt_forward.8} parent=1 // loop_header_branch
      %15 = sbr.rel (%p13) target = $region8
    $region5: #{nmt_forward.8} parent=1 // loop_body
      %s17 = ssub.s32 %s12, 1
      %s18 = ssub.s32 %s12, 2
      %s25 = sadd.s32 1, %s20
      %p26 = scmp.ge.s32.totalorder %s25, 5
      %s27 = scalar_select %p26, 0, %s25
      %s28 = sadd.s32 1, %s19
      %s29 = scalar_select %p26, %s28, %s19
      %p30 = scmp.ge.s32.totalorder %s29, 5
      %s31 = scalar_select %p30, 0, %s29
      %s32 = ssub.s32 %s20, %s27
      %p33 = scmp.eq.s32.totalorder %s32, 0
      %s35 = sadd.s32 %s34, 1
      %s36 = scalar_select %p33, %s34, %s35
      %p39 = pneg %p33
      %p40 = scmp.eq.s32.totalorder %s12, 24
      %p41 = por %p39, %p40
      %p42 = scmp.ne.s32.totalorder %s34, %s37
      %p43 = scmp.eq.s32.totalorder %s12, 0
      %p44 = por %p42, %p43
      %p45 = scmp.ne.s32.totalorder %s34, %s37
      %p46 = scmp.eq.s32.totalorder %s17, 24
      %p47 = por %p45, %p46
      %p48 = scmp.ne.s32.totalorder %s37, %s38
      %p49 = scmp.eq.s32.totalorder %s17, 0
      %p50 = por %p48, %p49
      %p51 = scmp.ne.s32.totalorder %s37, %s38
      %p52 = scmp.eq.s32.totalorder %s18, 24
      %p53 = por %p51, %p52
      %p55 = scmp.ne.s32.totalorder %s38, %s54
      %p56 = scmp.eq.s32.totalorder %s18, 0
      %p57 = por %p55, %p56
      %s58 = ssub.s32 %s20, %s27
      %s59 = ssub.s32 %s19, %s31
      %s60 = sor.u32 %s58, %s59
      %p61 = scmp.eq.s32.totalorder %s60, 0
      %s63 = sadd.s32 %s62, 1
      %s64 = scalar_select %p61, %s62, %s63
      %p67 = pneg %p61
      %p68 = scmp.eq.s32.totalorder %s12, 24
      %p69 = por %p67, %p68
      %p70 = scmp.ne.s32.totalorder %s62, %s65
      %p71 = scmp.eq.s32.totalorder %s12, 0
      %p72 = por %p70, %p71
      %p73 = scmp.ne.s32.totalorder %s62, %s65
      %p74 = scmp.eq.s32.totalorder %s17, 24
      %p75 = por %p73, %p74
      %p76 = scmp.ne.s32.totalorder %s65, %s66
      %p77 = scmp.eq.s32.totalorder %s17, 0
      %p78 = por %p76, %p77
      %p79 = scmp.ne.s32.totalorder %s65, %s66
      %p80 = scmp.eq.s32.totalorder %s18, 24
      %p81 = por %p79, %p80
      %p83 = scmp.ne.s32.totalorder %s66, %s82
      %p84 = scmp.eq.s32.totalorder %s18, 0
      %p85 = por %p83, %p84
      %s86 = ssub.s32 %s19, %s31
      %p87 = scmp.eq.s32.totalorder %s86, 0
      %s89 = sadd.s32 %s88, 1
      %s90 = scalar_select %p87, %s88, %s89
      %p93 = pneg %p87
      %p94 = scmp.eq.s32.totalorder %s12, 24
      %p95 = por %p93, %p94
      %p96 = scmp.ne.s32.totalorder %s88, %s91
      %p97 = scmp.eq.s32.totalorder %s12, 0
      %p98 = por %p96, %p97
      %p99 = scmp.ne.s32.totalorder %s88, %s91
      %p100 = scmp.eq.s32.totalorder %s17, 24
      %p101 = por %p99, %p100
      %p102 = scmp.ne.s32.totalorder %s91, %s92
      %p103 = scmp.eq.s32.totalorder %s17, 0
      %p104 = por %p102, %p103
      %p105 = scmp.ne.s32.totalorder %s91, %s92
      %p106 = scmp.eq.s32.totalorder %s18, 24
      %p107 = por %p105, %p106
      %p109 = scmp.ne.s32.totalorder %s92, %s108
      %p110 = scmp.eq.s32.totalorder %s18, 0
      %p111 = por %p109, %p110
      %s112 = ssub.s32 %s19, %s31
      %p113 = scmp.eq.s32.totalorder %s112, 0
      %s115 = sadd.s32 %s114, 1
      %s116 = scalar_select %p113, %s114, %s115
      %p119 = pneg %p113
      %p120 = scmp.eq.s32.totalorder %s12, 24
      %p121 = por %p119, %p120
      %p122 = scmp.ne.s32.totalorder %s114, %s117
      %p123 = scmp.eq.s32.totalorder %s12, 0
      %p124 = por %p122, %p123
      %p125 = scmp.ne.s32.totalorder %s114, %s117
      %p126 = scmp.eq.s32.totalorder %s17, 24
      %p127 = por %p125, %p126
      %p128 = scmp.ne.s32.totalorder %s117, %s118
      %p129 = scmp.eq.s32.totalorder %s17, 0
      %p130 = por %p128, %p129
      %p131 = scmp.ne.s32.totalorder %s117, %s118
      %p132 = scmp.eq.s32.totalorder %s18, 24
      %p133 = por %p131, %p132
      %p135 = scmp.ne.s32.totalorder %s118, %s134
      %p136 = scmp.eq.s32.totalorder %s18, 0
      %p137 = por %p135, %p136
      %p138 = scmp.le.s32.totalorder 1, %s12
      %p139 = scmp.lt.s32.totalorder %s12, 26
      %p140 = pnand %p138, %p139
      %p141 = pneg %p140
      // Predicated region
      $region9: #{nmt_forward.8} parent=5 // pred_check
        _
      $region10: #{nmt_forward.8} parent=5 // pred_check_branch
        %143 = sbr.rel (%p140) target = $region12
      $region11: #{nmt_forward.8} parent=5 // pred_region
        %s144 = ssub.s32 %s12, 1
      $region12: #{nmt_forward.8} parent=5 // pred_fallthru
        _
      %p145 = scmp.lt.s32.totalorder %s12, 25
      // Predicated region
      $region13: #{nmt_forward.8} parent=5 // pred_check
        %p146 = pneg %p145
      $region14: #{nmt_forward.8} parent=5 // pred_check_branch
        %148 = sbr.rel (%p146) target = $region16
      $region15: #{nmt_forward.8} parent=5 // pred_region
        // Predicated region
        $region17: #{nmt_forward.8} parent=15 // pred_check
          %p149 = pneg %p44
        $region18: #{nmt_forward.8} parent=15 // pred_check_branch
          %151 = sbr.rel (%p149) target = $region20
        $region19: #{nmt_forward.8} parent=15 // pred_region
          %p152 = scmp.lt.s32.totalorder %s20, 4
          %s153 = scalar_select %p152, %s20, 4
          %s154 = smul.addr %s153, 4
          %s155 = scalar_lea.vmem %s0, %s154
        $region20: #{nmt_forward.8} parent=15 // pred_fallthru
          _
        // Predicated region
        $region21: #{nmt_forward.8} parent=15 // pred_check
          %p156 = pneg %p72
        $region22: #{nmt_forward.8} parent=15 // pred_check_branch
          %158 = sbr.rel (%p156) target = $region24
        $region23: #{nmt_forward.8} parent=15 // pred_region
          %s159 = sand.u32 %s62, 1
          %s160 = scalar_lea.sflag [#allocation4], %s159
          %s161 = sand.u32 %s62, 1
          %s162 = smul.addr %s161, 128
          %s163 = scalar_lea.vmem [#allocation3], %s162
          %s164 = smul.u32 16, %s20
          %166 = vsyncadd %s160, 0
          %s167 = smul.addr %s164, 5
          %s168 = sadd.s32 %s19, %s167
          %s169 = smul.addr %s168, 8
          %s170 = scalar_lea.hbm %s1, %s169
          %s171 = sshll.u32 %s170, 4
          %s172 = int_to_ptr.hbm [resolvable:$true] %s171
          %s173 = sshll.u32 %s163, 4
          %s174 = int_to_ptr.vmem [resolvable:$true] %s173
          %179 = dma.hbm_to_vmem [thread:$0]  %s172, 2048, %s174, %s160, 640, 128, 8
        $region24: #{nmt_forward.8} parent=15 // pred_fallthru
          _
        // Predicated region
        $region25: #{nmt_forward.8} parent=15 // pred_check
          %p180 = pneg %p98
        $region26: #{nmt_forward.8} parent=15 // pred_check_branch
          %182 = sbr.rel (%p180) target = $region28
        $region27: #{nmt_forward.8} parent=15 // pred_region
          %p183 = scmp.lt.s32.totalorder %s19, 4
          %s184 = scalar_select %p183, %s19, 4
          %s185 = scalar_lea.vmem %s2, %s184
        $region28: #{nmt_forward.8} parent=15 // pred_fallthru
          _
      $region16: #{nmt_forward.8} parent=5 // pred_fallthru
        _
      %p186 = scmp.le.s32.totalorder 1, %s12
      %p187 = scmp.lt.s32.totalorder %s12, 26
      %p188 = pnand %p186, %p187
      %p189 = pneg %p188
      // Predicated region
      $region29: #{nmt_forward.8} parent=5 // pred_check
        _
      $region30: #{nmt_forward.8} parent=5 // pred_check_branch
        %191 = sbr.rel (%p188) target = $region32
      $region31: #{nmt_forward.8} parent=5 // pred_region
        %s192 = ssub.s32 %s12, 1
        %s193 = sand.u32 %s65, 1
        %s194 = scalar_lea.sflag [#allocation4], %s193
        %s195 = sand.u32 %s65, 1
        %s196 = smul.addr %s195, 128
        %s197 = scalar_lea.vmem [#allocation3], %s196
        // Predicated region
        $region33: #{nmt_forward.8} parent=31 // pred_check
          %p198 = pneg %p78
        $region34: #{nmt_forward.8} parent=31 // pred_check_branch
          %200 = sbr.rel (%p198) target = $region36
        $region35: #{nmt_forward.8} parent=31 // pred_region
          %202 = dma.done %s194, 2048
        $region36: #{nmt_forward.8} parent=31 // pred_fallthru
          _
        %p203 = scmp.lt.s32.totalorder %s22, 4
        %s204 = scalar_select %p203, %s22, 4
        %s205 = smul.addr %s204, 4
        %s206 = scalar_lea.vmem %s0, %s205
        %p207 = pneg %p50
        %p208 = pneg %p47
        %s209 = sand.u32 %s65, 1
        %s210 = scalar_lea.sflag [#allocation4], %s209
        %s211 = sand.u32 %s65, 1
        %s212 = smul.addr %s211, 128
        %s213 = scalar_lea.vmem [#allocation3], %s212
        %p214 = pneg %p78
        %p215 = pneg %p75
        %p216 = scmp.lt.s32.totalorder %s21, 4
        %s217 = scalar_select %p216, %s21, 4
        %s218 = scalar_lea.vmem %s2, %s217
        %p219 = pneg %p104
        %p220 = pneg %p101
        %p221 = pneg %p130
        %p222 = pneg %p127
        %p223 = scmp.lt.s32.totalorder %s21, 4
        %s224 = scalar_select %p223, %s21, 4
        %s225 = smul.addr %s224, 4
        %s226 = scalar_lea.vmem %s3, %s225
        %p227 = scmp.lt.s32.totalorder %s22, 4
        %s228 = scalar_select %p227, %s22, 4
        %s229 = smul.addr %s228, 4
        %s230 = scalar_lea.vmem %s0, %s229
        %s231 = smul.u32 16, %s22
        %p232 = scmp.lt.s32.totalorder %s21, 4
        %s233 = scalar_select %p232, %s21, 4
        %s234 = scalar_lea.vmem %s2, %s233
        %p235 = scmp.lt.s32.totalorder %s21, 4
        %s236 = scalar_select %p235, %s21, 4
        %s237 = smul.addr %s236, 4
        %s238 = scalar_lea.vmem %s3, %s237
        %p239 = scmp.eq.s32.totalorder %s22, 0
        // Predicated region
        $region37: #{nmt_forward.8} parent=31 // pred_check
          %p240 = pneg %p239
        $region38: #{nmt_forward.8} parent=31 // pred_check_branch
          %242 = sbr.rel (%p240) target = $region40
        $region39: #{nmt_forward.8} parent=31 // pred_region
          %243 = vst [vmem:[#allocation2] sm:$0xf] 0.0
        $region40: #{nmt_forward.8} parent=31 // pred_fallthru
          _
        %v244 = vld [vmem:[#allocation2] sm:$0xf]
        %v245 = vld [vmem:[%s230] sm:$0xf]
        %v246 = vld [vmem:[%s197] sm:$0xff]
        %v247 = vld [vmem:[%s197 + $0x8] sm:$0xff]
        %v248 = vld [vmem:[%s197 + $0x10] sm:$0xff]
        %v249 = vld [vmem:[%s197 + $0x18] sm:$0xff]
        %v250 = vld [vmem:[%s197 + $0x20] sm:$0xff]
        %v251 = vld [vmem:[%s197 + $0x28] sm:$0xff]
        %v252 = vld [vmem:[%s197 + $0x30] sm:$0xff]
        %v253 = vld [vmem:[%s197 + $0x38] sm:$0xff]
        %v254 = vld [vmem:[%s197 + $0x40] sm:$0xff]
        %v255 = vld [vmem:[%s197 + $0x48] sm:$0xff]
        %v256 = vld [vmem:[%s197 + $0x50] sm:$0xff]
        %v257 = vld [vmem:[%s197 + $0x58] sm:$0xff]
        %v258 = vld [vmem:[%s197 + $0x60] sm:$0xff]
        %v259 = vld [vmem:[%s197 + $0x68] sm:$0xff]
        %v260 = vld [vmem:[%s197 + $0x70] sm:$0xff]
        %v261 = vld [vmem:[%s197 + $0x78] sm:$0xff]
        %262 = vmatpush.msra.mxu0 %v261
        %263 = vmatpush.msra.mxu0 %v260
        %264 = vmatpush.msra.mxu0 %v259
        %265 = vmatpush.msra.mxu0 %v258
        %266 = vmatpush.msra.mxu0 %v257
        %267 = vmatpush.msra.mxu0 %v256
        %268 = vmatpush.msra.mxu0 %v255
        %269 = vmatpush.msra.mxu0 %v254
        %270 = vmatpush.msra.mxu0 %v253
        %271 = vmatpush.msra.mxu0 %v252
        %272 = vmatpush.msra.mxu0 %v251
        %273 = vmatpush.msra.mxu0 %v250
        %274 = vmatpush.msra.mxu0 %v249
        %275 = vmatpush.msra.mxu0 %v248
        %276 = vmatpush.msra.mxu0 %v247
        %277 = vmatpush.msra.mxu0 %v246
        %278 = vmatmul.f32.gmra.mxu0 %v245
        %v279 = vpop.f32.mrf.mxu0
        %v280 = vadd.f32 0.0, %v279
        %281 = vdwg.mxu0
        %v282 = vadd.f32 %v244, %v280
        %283 = vst [vmem:[#allocation2] sm:$0xf] %v282
        %p284 = scmp.eq.s32.totalorder %s22, 4
        // Predicated region
        $region41: #{nmt_forward.8} parent=31 // pred_check
          %p285 = pneg %p284
        $region42: #{nmt_forward.8} parent=31 // pred_check_branch
          %287 = sbr.rel (%p285) target = $region44
        $region43: #{nmt_forward.8} parent=31 // pred_region
          %v288 = vld [vmem:[#allocation2] sm:$0xf]
          %v289 = vld [vmem:[%s234] sm:$0x1]
          %v291 = vperm.slane %v289, 0
          %v293 = vadd.f32 %v288, %v291
          %294 = vst [vmem:[%s238] sm:$0xf] %v293
        $region44: #{nmt_forward.8} parent=31 // pred_fallthru
          _
        %p295 = scmp.lt.s32.totalorder %s21, 4
        %s296 = scalar_select %p295, %s21, 4
        %s297 = smul.addr %s296, 4
        %s298 = scalar_lea.vmem %s3, %s297
        // Predicated region
        $region45: #{nmt_forward.8} parent=31 // pred_check
          %p299 = pneg %p127
        $region46: #{nmt_forward.8} parent=31 // pred_check_branch
          %301 = sbr.rel (%p299) target = $region48
        $region47: #{nmt_forward.8} parent=31 // pred_region
          _
        $region48: #{nmt_forward.8} parent=31 // pred_fallthru
          _
      $region32: #{nmt_forward.8} parent=5 // pred_fallthru
        _
      %p302 = scmp.le.s32.totalorder 2, %s12
      // Predicated region
      $region49: #{nmt_forward.8} parent=5 // pred_check
        %p303 = pneg %p302
      $region50: #{nmt_forward.8} parent=5 // pred_check_branch
        %305 = sbr.rel (%p303) target = $region52
      $region51: #{nmt_forward.8} parent=5 // pred_region
        %s306 = ssub.s32 %s12, 2
        // Predicated region
        $region53: #{nmt_forward.8} parent=51 // pred_check
          %p307 = pneg %p133
        $region54: #{nmt_forward.8} parent=51 // pred_check_branch
          %309 = sbr.rel (%p307) target = $region56
        $region55: #{nmt_forward.8} parent=51 // pred_region
          %p310 = scmp.lt.s32.totalorder %s23, 4
          %s311 = scalar_select %p310, %s23, 4
          %s312 = smul.addr %s311, 4
          %s313 = scalar_lea.vmem %s3, %s312
        $region56: #{nmt_forward.8} parent=51 // pred_fallthru
          _
      $region52: #{nmt_forward.8} parent=5 // pred_fallthru
        _
    $region6: #{nmt_forward.8} parent=1 // loop_footer
      %s16 = sadd.s32 1, %s12
    $region7: #{nmt_forward.8} parent=1 // loop_footer_branch
      %11 = sbr.rel target = $region3
    $region8: #{nmt_forward.8} parent=1 // loop_exit
      _
    %314 = vsyncpa [#allocation4], 1
    %s315 = scalar_lea.sflag [#allocation4], 1
    %316 = vsyncpa %s315, 1

// kernel: nmt_forward.9
$region0: #{nmt_forward.9}
  #allocation0 [shape = 'u32[]', space=smem, size = 0x4, offset = 0x4, fixed_abs, tag = 'smem constant byte address 0x4 - core index']
  #allocation1 [shape = 'u32[72,128]{1,0:T(1,128)}', space=vmem, size = 0x9000, scoped, tag = 'internal scratch']
  %s0 = inlined_call_operand.vmem [shape: f32[2,6,64], index: 0, kind: input, shape index: {}]
  %s1 = inlined_call_operand.vmem [shape: f32[2,22,64], index: 1, kind: input, shape index: {}]
  %s2 = inlined_call_operand.vmem [shape: f32[2,6,22], index: 2, kind: input, shape index: {}]
  %s3 = inlined_call_operand.hbm [shape: f32[64,64], index: 3, kind: input, shape index: {}]
  %s4 = inlined_call_operand.hbm [shape: f32[1,64], index: 4, kind: input, shape index: {}]
  %s5 = inlined_call_operand.vmem [shape: f32[128,64], index: 5, kind: input, shape index: {}]
  %s6 = inlined_call_operand.hbm [shape: f32[1,64], index: 6, kind: input, shape index: {}]
  %s7 = inlined_call_operand.vmem [shape: f32[2,6,64], index: 7, kind: output, shape index: {0}]
  %s8 = inlined_call_operand.vmem [shape: f32[2,6,22], index: 8, kind: output, shape index: {1}]
  %9 = xla_tuple %s7, %s8
  %s10 = sld [smem:[#allocation0]]
  $region58: #{nmt_forward.9} parent=0
    _
  %s12 = ssub.s32 1, %s10
  %s13 = scalar_select 0, %s12, %s10
  $region1: #{nmt_forward.9} parent=0
    #allocation2 [shape = 'u8[32768]{0}', space=vmem, size = 0x8000, scoped, tag = 'input window, operand 3, single buffered']
    #allocation3 [shape = 's32[1]{0}', space=sflag, size = 0x4, scoped, tag = 'scoped memory for nmt_forward.9']
    #allocation4 [shape = 'u8[512]{0}', space=vmem, size = 0x400, scoped, tag = 'input window, operand 4, single buffered']
    #allocation5 [shape = 's32[1]{0}', space=sflag, size = 0x4, scoped, tag = 'scoped memory for nmt_forward.9']
    #allocation6 [shape = 'u8[512]{0}', space=vmem, size = 0x400, scoped, tag = 'input window, operand 6, single buffered']
    %14 = vsyncpa [#allocation3], 0
    %15 = vsyncpa [#allocation5], 0
    // Predicated region
    $region2: #{nmt_forward.9} parent=1 // pred_check
      _
    $region3: #{nmt_forward.9} parent=1 // pred_check_branch
      %17 = sbr.rel (0) target = $region5
    $region4: #{nmt_forward.9} parent=1 // pred_region
      _
    $region5: #{nmt_forward.9} parent=1 // pred_fallthru
      _
    // Predicated region
    $region6: #{nmt_forward.9} parent=1 // pred_check
      _
    $region7: #{nmt_forward.9} parent=1 // pred_check_branch
      %19 = sbr.rel (0) target = $region9
    $region8: #{nmt_forward.9} parent=1 // pred_region
      _
    $region9: #{nmt_forward.9} parent=1 // pred_fallthru
      _
    // Predicated region
    $region10: #{nmt_forward.9} parent=1 // pred_check
      _
    $region11: #{nmt_forward.9} parent=1 // pred_check_branch
      %21 = sbr.rel (0) target = $region13
    $region12: #{nmt_forward.9} parent=1 // pred_region
      _
    $region13: #{nmt_forward.9} parent=1 // pred_fallthru
      _
    // Predicated region
    $region14: #{nmt_forward.9} parent=1 // pred_check
      _
    $region15: #{nmt_forward.9} parent=1 // pred_check_branch
      %23 = sbr.rel (0) target = $region17
    $region16: #{nmt_forward.9} parent=1 // pred_region
      %25 = vsyncadd [#allocation3], 0
      %s26 = sshll.u32 %s3, 4
      %s27 = int_to_ptr.hbm [resolvable:$true] %s26
      %s28 = sshll.u32 [#allocation2], 4
      %s29 = int_to_ptr.vmem [resolvable:$true] %s28
      %34 = dma.hbm_to_vmem [thread:$0]  %s27, 1024, %s29, [#allocation3], 128, 128, 8
    $region17: #{nmt_forward.9} parent=1 // pred_fallthru
      _
    // Predicated region
    $region18: #{nmt_forward.9} parent=1 // pred_check
      _
    $region19: #{nmt_forward.9} parent=1 // pred_check_branch
      %36 = sbr.rel (0) target = $region21
    $region20: #{nmt_forward.9} parent=1 // pred_region
      %38 = vsyncadd [#allocation5], 0
      %s40 = sshll.u32 %s4, 4
      %s41 = int_to_ptr.hbm [resolvable:$true] %s40
      %s42 = sshll.u32 [#allocation4], 4
      %s43 = int_to_ptr.vmem [resolvable:$true] %s42
      %45 = dma.hbm_to_vmem [thread:$0]  %s41, 16, %s43, [#allocation5]
    $region21: #{nmt_forward.9} parent=1 // pred_fallthru
      _
    // Predicated region
    $region22: #{nmt_forward.9} parent=1 // pred_check
      _
    $region23: #{nmt_forward.9} parent=1 // pred_check_branch
      %47 = sbr.rel (0) target = $region25
    $region24: #{nmt_forward.9} parent=1 // pred_region
      _
    $region25: #{nmt_forward.9} parent=1 // pred_fallthru
      _
    // Predicated region
    $region26: #{nmt_forward.9} parent=1 // pred_check
      _
    $region27: #{nmt_forward.9} parent=1 // pred_check_branch
      %49 = sbr.rel (0) target = $region29
    $region28: #{nmt_forward.9} parent=1 // pred_region
      %51 = vsyncadd [#allocation5], 0
      %s53 = sshll.u32 %s6, 4
      %s54 = int_to_ptr.hbm [resolvable:$true] %s53
      %s55 = sshll.u32 [#allocation6], 4
      %s56 = int_to_ptr.vmem [resolvable:$true] %s55
      %58 = dma.hbm_to_vmem [thread:$0]  %s54, 16, %s56, [#allocation5]
    $region29: #{nmt_forward.9} parent=1 // pred_fallthru
      _
    // Predicated region
    $region30: #{nmt_forward.9} parent=1 // pred_check
      _
    $region31: #{nmt_forward.9} parent=1 // pred_check_branch
      %60 = sbr.rel (0) target = $region33
    $region32: #{nmt_forward.9} parent=1 // pred_region
      %62 = dma.done [#allocation3], 1024
    $region33: #{nmt_forward.9} parent=1 // pred_fallthru
      _
    // Predicated region
    $region34: #{nmt_forward.9} parent=1 // pred_check
      _
    $region35: #{nmt_forward.9} parent=1 // pred_check_branch
      %64 = sbr.rel (0) target = $region37
    $region36: #{nmt_forward.9} parent=1 // pred_region
      %66 = dma.done [#allocation5], 16
    $region37: #{nmt_forward.9} parent=1 // pred_fallthru
      _
    // Predicated region
    $region38: #{nmt_forward.9} parent=1 // pred_check
      _
    $region39: #{nmt_forward.9} parent=1 // pred_check_branch
      %68 = sbr.rel (0) target = $region41
    $region40: #{nmt_forward.9} parent=1 // pred_region
      %70 = dma.done [#allocation5], 16
    $region41: #{nmt_forward.9} parent=1 // pred_fallthru
      _
    %v71 = vld [vmem:[%s0] sm:$0x3f]
    %v72 = vld [vmem:[#allocation2] sm:$0xff]
    %v73 = vld [vmem:[#allocation2 + $0x8] sm:$0xff]
    %v74 = vld [vmem:[#allocation2 + $0x10] sm:$0xff]
    %v75 = vld [vmem:[#allocation2 + $0x18] sm:$0xff]
    %v76 = vld [vmem:[#allocation2 + $0x20] sm:$0xff]
    %v77 = vld [vmem:[#allocation2 + $0x28] sm:$0xff]
    %v78 = vld [vmem:[#allocation2 + $0x30] sm:$0xff]
    %v79 = vld [vmem:[#allocation2 + $0x38] sm:$0xff]
    %v80 = vld [vmem:[#allocation4] sm:$0x1]
    %v82 = vperm.slane %v80, 0
    %vm84 = vcmask 523264
    %v86 = vsel %vm84, %v71, 0
    %88 = vmatpush.msra.mxu0 0.0
    %89 = vmatpush.msra.mxu0 0.0
    %90 = vmatpush.msra.mxu0 0.0
    %91 = vmatpush.msra.mxu0 0.0
    %92 = vmatpush.msra.mxu0 0.0
    %93 = vmatpush.msra.mxu0 0.0
    %94 = vmatpush.msra.mxu0 0.0
    %95 = vmatpush.msra.mxu0 0.0
    %96 = vmatpush.msra.mxu0 %v79
    %97 = vmatpush.msra.mxu0 %v78
    %98 = vmatpush.msra.mxu0 %v77
    %99 = vmatpush.msra.mxu0 %v76
    %100 = vmatpush.msra.mxu0 %v75
    %101 = vmatpush.msra.mxu0 %v74
    %102 = vmatpush.msra.mxu0 %v73
    %103 = vmatpush.msra.mxu0 %v72
    %104 = vmatmul.f32.gmra.mxu0 %v86
    %v105 = vpop.f32.mrf.mxu0
    %v106 = vadd.f32 %v82, %v105
    %107 = vdwg.mxu0
    %v108 = vtanh.pop %v106
    %v109 = vld [vmem:[%s1] sm:$0xff]
    %v110 = vld [vmem:[%s1 + $0x8] sm:$0xff]
    %v111 = vld [vmem:[%s1 + $0x10] sm:$0x3f]
    %v112 = vld [vmem:[%s2] sm:$0x3f]
    %v114 = vsel %vm84, %v108, 0
    %v117 = vsel %vm84, %v109, 0
    %v120 = vsel %vm84, %v110, 0
    %v123 = vsel %vm84, %v111, 0
    %125 = vmatpush.xpose.msra.mxu0 0.0
    %126 = vmatpush.xpose.msra.mxu0 0.0
    %127 = vmatpush.xpose.msra.mxu0 0.0
    %128 = vmatpush.xpose.msra.mxu0 0.0
    %129 = vmatpush.xpose.msra.mxu0 0.0
    %130 = vmatpush.xpose.msra.mxu0 0.0
    %131 = vmatpush.xpose.msra.mxu0 0.0
    %132 = vmatpush.xpose.msra.mxu0 0.0
    %133 = vmatpush.xpose.msra.mxu0 0.0
    %134 = vmatpush.xpose.msra.mxu0 0.0
    %135 = vmatpush.xpose.msra.mxu0 0.0
    %136 = vmatpush.xpose.msra.mxu0 0.0
    %137 = vmatpush.xpose.msra.mxu0 0.0
    %138 = vmatpush.xpose.msra.mxu0 %v123
    %139 = vmatpush.xpose.msra.mxu0 %v120
    %140 = vmatpush.xpose.msra.mxu0 %v117
    %141 = vmatmul.f32.gmra.mxu0 %v114
    %v142 = vpop.f32.mrf.mxu0
    %v143 = vadd.f32 %v112, %v142
    %144 = vdwg.mxu0
    %vm145 = vcmask 177152
    %v146 = vsel %vm145, %v143, -inf
    %147 = vmax.xlane.f32.xlu0 %v146
    %v148 = vpop.xlane.xlu0 %147
    %v149 = vsub.f32 %v143, %v148
    %v150 = vmul.f32 %v149, 1.442695
    %v151 = vpow.pop %v150
    %v152 = vsel %vm145, %v151, 0.0
    %153 = vadd.xlane.f32.xlu0 %v152
    %v154 = vpop.xlane.xlu0 %153
    %v155 = vrcp.pop %v154
    %v156 = vmul.f32 %v151, %v155
    %157 = vst.msk [vmem:[%s8] sm:$0x3f] %vm145, %v156
    %vm158 = vcmask 179200
    %v160 = vsel %vm158, %v156, 0
    %vm162 = vcmask 1045504
    %v163 = vsel %vm162, %v111, 0
    %165 = vmatpush.msra.mxu0 0.0
    %166 = vmatpush.msra.mxu0 0.0
    %167 = vmatpush.msra.mxu0 0.0
    %168 = vmatpush.msra.mxu0 0.0
    %169 = vmatpush.msra.mxu0 0.0
    %170 = vmatpush.msra.mxu0 0.0
    %171 = vmatpush.msra.mxu0 0.0
    %172 = vmatpush.msra.mxu0 0.0
    %173 = vmatpush.msra.mxu0 0.0
    %174 = vmatpush.msra.mxu0 0.0
    %175 = vmatpush.msra.mxu0 0.0
    %176 = vmatpush.msra.mxu0 0.0
    %177 = vmatpush.msra.mxu0 0.0
    %178 = vmatpush.msra.mxu0 %v163
    %179 = vmatpush.msra.mxu0 %v110
    %180 = vmatpush.msra.mxu0 %v109
    %181 = vmatmul.f32.gmra.mxu0 %v160
    %v182 = vpop.f32.mrf.mxu0
    %v183 = vadd.f32 0.0, %v182
    %184 = vdwg.mxu0
    %v185 = vld [vmem:[%s5] sm:$0xff]
    %v186 = vld [vmem:[%s5 + $0x8] sm:$0xff]
    %v187 = vld [vmem:[%s5 + $0x10] sm:$0xff]
    %v188 = vld [vmem:[%s5 + $0x18] sm:$0xff]
    %v189 = vld [vmem:[%s5 + $0x20] sm:$0xff]
    %v190 = vld [vmem:[%s5 + $0x28] sm:$0xff]
    %v191 = vld [vmem:[%s5 + $0x30] sm:$0xff]
    %v192 = vld [vmem:[%s5 + $0x38] sm:$0xff]
    %v193 = vld [vmem:[%s5 + $0x40] sm:$0xff]
    %v194 = vld [vmem:[%s5 + $0x48] sm:$0xff]
    %v195 = vld [vmem:[%s5 + $0x50] sm:$0xff]
    %v196 = vld [vmem:[%s5 + $0x58] sm:$0xff]
    %v197 = vld [vmem:[%s5 + $0x60] sm:$0xff]
    %v198 = vld [vmem:[%s5 + $0x68] sm:$0xff]
    %v199 = vld [vmem:[%s5 + $0x70] sm:$0xff]
    %v200 = vld [vmem:[%s5 + $0x78] sm:$0xff]
    %v202 = vsel %vm84, %v183, 0
    %204 = vmatpush.msra.mxu0 0.0
    %205 = vmatpush.msra.mxu0 0.0
    %206 = vmatpush.msra.mxu0 0.0
    %207 = vmatpush.msra.mxu0 0.0
    %208 = vmatpush.msra.mxu0 0.0
    %209 = vmatpush.msra.mxu0 0.0
    %210 = vmatpush.msra.mxu0 0.0
    %211 = vmatpush.msra.mxu0 0.0
    %212 = vmatpush.msra.mxu0 %v200
    %213 = vmatpush.msra.mxu0 %v199
    %214 = vmatpush.msra.mxu0 %v198
    %215 = vmatpush.msra.mxu0 %v197
    %216 = vmatpush.msra.mxu0 %v196
    %217 = vmatpush.msra.mxu0 %v195
    %218 = vmatpush.msra.mxu0 %v194
    %219 = vmatpush.msra.mxu0 %v193
    %220 = vmatmul.f32.gmra.mxu0 %v202
    %v221 = vpop.f32.mrf.mxu0
    %v222 = vadd.f32 0.0, %v221
    %223 = vdwg.mxu0
    %224 = vmatpush.msra.mxu0 0.0
    %225 = vmatpush.msra.mxu0 0.0
    %226 = vmatpush.msra.mxu0 0.0
    %227 = vmatpush.msra.mxu0 0.0
    %228 = vmatpush.msra.mxu0 0.0
    %229 = vmatpush.msra.mxu0 0.0
    %230 = vmatpush.msra.mxu0 0.0
    %231 = vmatpush.msra.mxu0 0.0
    %232 = vmatpush.msra.mxu0 %v192
    %233 = vmatpush.msra.mxu0 %v191
    %234 = vmatpush.msra.mxu0 %v190
    %235 = vmatpush.msra.mxu0 %v189
    %236 = vmatpush.msra.mxu0 %v188
    %237 = vmatpush.msra.mxu0 %v187
    %238 = vmatpush.msra.mxu0 %v186
    %239 = vmatpush.msra.mxu0 %v185
    %240 = vmatmul.f32.gmra.mxu0 %v114
    %v241 = vpop.f32.mrf.mxu0
    %v242 = vadd.f32 %v222, %v241
    %243 = vdwg.mxu0
    %v244 = vld [vmem:[#allocation6] sm:$0x1]
    %v246 = vperm.slane %v244, 0
    %v248 = vadd.f32 %v242, %v246
    %v249 = vtanh.pop %v248
    %vm250 = vcmask 521216
    %251 = vst.msk [vmem:[%s7] sm:$0x3f] %vm250, %v249
    %s252 = scalar_lea.vmem %s0, 8
    %v253 = vld [vmem:[%s252] sm:$0x3f]
    %v254 = vld [vmem:[#allocation2] sm:$0xff]
    %v255 = vld [vmem:[#allocation2 + $0x8] sm:$0xff]
    %v256 = vld [vmem:[#allocation2 + $0x10] sm:$0xff]
    %v257 = vld [vmem:[#allocation2 + $0x18] sm:$0xff]
    %v258 = vld [vmem:[#allocation2 + $0x20] sm:$0xff]
    %v259 = vld [vmem:[#allocation2 + $0x28] sm:$0xff]
    %v260 = vld [vmem:[#allocation2 + $0x30] sm:$0xff]
    %v261 = vld [vmem:[#allocation2 + $0x38] sm:$0xff]
    %v262 = vld [vmem:[#allocation4] sm:$0x1]
    %v264 = vperm.slane %v262, 0
    %v267 = vsel %vm84, %v253, 0
    %269 = vmatpush.msra.mxu0 0.0
    %270 = vmatpush.msra.mxu0 0.0
    %271 = vmatpush.msra.mxu0 0.0
    %272 = vmatpush.msra.mxu0 0.0
    %273 = vmatpush.msra.mxu0 0.0
    %274 = vmatpush.msra.mxu0 0.0
    %275 = vmatpush.msra.mxu0 0.0
    %276 = vmatpush.msra.mxu0 0.0
    %277 = vmatpush.msra.mxu0 %v261
    %278 = vmatpush.msra.mxu0 %v260
    %279 = vmatpush.msra.mxu0 %v259
    %280 = vmatpush.msra.mxu0 %v258
    %281 = vmatpush.msra.mxu0 %v257
    %282 = vmatpush.msra.mxu0 %v256
    %283 = vmatpush.msra.mxu0 %v255
    %284 = vmatpush.msra.mxu0 %v254
    %285 = vmatmul.f32.gmra.mxu0 %v267
    %v286 = vpop.f32.mrf.mxu0
    %v287 = vadd.f32 %v264, %v286
    %288 = vdwg.mxu0
    %v289 = vtanh.pop %v287
    %s290 = scalar_lea.vmem %s1, 24
    %v291 = vld [vmem:[%s290] sm:$0xff]
    %v292 = vld [vmem:[%s290 + $0x8] sm:$0xff]
    %v293 = vld [vmem:[%s290 + $0x10] sm:$0x3f]
    %s294 = scalar_lea.vmem %s2, 8
    %v295 = vld [vmem:[%s294] sm:$0x3f]
    %v297 = vsel %vm84, %v289, 0
    %v300 = vsel %vm84, %v291, 0
    %v303 = vsel %vm84, %v292, 0
    %v306 = vsel %vm84, %v293, 0
    %308 = vmatpush.xpose.msra.mxu0 0.0
    %309 = vmatpush.xpose.msra.mxu0 0.0
    %310 = vmatpush.xpose.msra.mxu0 0.0
    %311 = vmatpush.xpose.msra.mxu0 0.0
    %312 = vmatpush.xpose.msra.mxu0 0.0
    %313 = vmatpush.xpose.msra.mxu0 0.0
    %314 = vmatpush.xpose.msra.mxu0 0.0
    %315 = vmatpush.xpose.msra.mxu0 0.0
    %316 = vmatpush.xpose.msra.mxu0 0.0
    %317 = vmatpush.xpose.msra.mxu0 0.0
    %318 = vmatpush.xpose.msra.mxu0 0.0
    %319 = vmatpush.xpose.msra.mxu0 0.0
    %320 = vmatpush.xpose.msra.mxu0 0.0
    %321 = vmatpush.xpose.msra.mxu0 %v306
    %322 = vmatpush.xpose.msra.mxu0 %v303
    %323 = vmatpush.xpose.msra.mxu0 %v300
    %324 = vmatmul.f32.gmra.mxu0 %v297
    %v325 = vpop.f32.mrf.mxu0
    %v326 = vadd.f32 %v295, %v325
    %327 = vdwg.mxu0
    %v328 = vsel %vm145, %v326, -inf
    %329 = vmax.xlane.f32.xlu0 %v328
    %v330 = vpop.xlane.xlu0 %329
    %v331 = vsub.f32 %v326, %v330
    %v332 = vmul.f32 %v331, 1.442695
    %v333 = vpow.pop %v332
    %v334 = vsel %vm145, %v333, 0.0
    %335 = vadd.xlane.f32.xlu0 %v334
    %v336 = vpop.xlane.xlu0 %335
    %v337 = vrcp.pop %v336
    %v338 = vmul.f32 %v333, %v337
    %s339 = scalar_lea.vmem %s8, 8
    %340 = vst.msk [vmem:[%s339] sm:$0x3f] %vm145, %v338
    %v342 = vsel %vm158, %v338, 0
    %v344 = vsel %vm162, %v293, 0
    %346 = vmatpush.msra.mxu0 0.0
    %347 = vmatpush.msra.mxu0 0.0
    %348 = vmatpush.msra.mxu0 0.0
    %349 = vmatpush.msra.mxu0 0.0
    %350 = vmatpush.msra.mxu0 0.0
    %351 = vmatpush.msra.mxu0 0.0
    %352 = vmatpush.msra.mxu0 0.0
    %353 = vmatpush.msra.mxu0 0.0
    %354 = vmatpush.msra.mxu0 0.0
    %355 = vmatpush.msra.mxu0 0.0
    %356 = vmatpush.msra.mxu0 0.0
    %357 = vmatpush.msra.mxu0 0.0
    %358 = vmatpush.msra.mxu0 0.0
    %359 = vmatpush.msra.mxu0 %v344
    %360 = vmatpush.msra.mxu0 %v292
    %361 = vmatpush.msra.mxu0 %v291
    %362 = vmatmul.f32.gmra.mxu0 %v342
    %v363 = vpop.f32.mrf.mxu0
    %v364 = vadd.f32 0.0, %v363
    %365 = vdwg.mxu0
    %v366 = vld [vmem:[%s5] sm:$0xff]
    %v367 = vld [vmem:[%s5 + $0x8] sm:$0xff]
    %v368 = vld [vmem:[%s5 + $0x10] sm:$0xff]
    %v369 = vld [vmem:[%s5 + $0x18] sm:$0xff]
    %v370 = vld [vmem:[%s5 + $0x20] sm:$0xff]
    %v371 = vld [vmem:[%s5 + $0x28] sm:$0xff]
    %v372 = vld [vmem:[%s5 + $0x30] sm:$0xff]
    %v373 = vld [vmem:[%s5 + $0x38] sm:$0xff]
    %v374 = vld [vmem:[%s5 + $0x40] sm:$0xff]
    %v375 = vld [vmem:[%s5 + $0x48] sm:$0xff]
    %v376 = vld [vmem:[%s5 + $0x50] sm:$0xff]
    %v377 = vld [vmem:[%s5 + $0x58] sm:$0xff]
    %v378 = vld [vmem:[%s5 + $0x60] sm:$0xff]
    %v379 = vld [vmem:[%s5 + $0x68] sm:$0xff]
    %v380 = vld [vmem:[%s5 + $0x70] sm:$0xff]
    %v381 = vld [vmem:[%s5 + $0x78] sm:$0xff]
    %v383 = vsel %vm84, %v364, 0
    %385 = vmatpush.msra.mxu0 0.0
    %386 = vmatpush.msra.mxu0 0.0
    %387 = vmatpush.msra.mxu0 0.0
    %388 = vmatpush.msra.mxu0 0.0
    %389 = vmatpush.msra.mxu0 0.0
    %390 = vmatpush.msra.mxu0 0.0
    %391 = vmatpush.msra.mxu0 0.0
    %392 = vmatpush.msra.mxu0 0.0
    %393 = vmatpush.msra.mxu0 %v381
    %394 = vmatpush.msra.mxu0 %v380
    %395 = vmatpush.msra.mxu0 %v379
    %396 = vmatpush.msra.mxu0 %v378
    %397 = vmatpush.msra.mxu0 %v377
    %398 = vmatpush.msra.mxu0 %v376
    %399 = vmatpush.msra.mxu0 %v375
    %400 = vmatpush.msra.mxu0 %v374
    %401 = vmatmul.f32.gmra.mxu0 %v383
    %v402 = vpop.f32.mrf.mxu0
    %v403 = vadd.f32 0.0, %v402
    %404 = vdwg.mxu0
    %405 = vmatpush.msra.mxu0 0.0
    %406 = vmatpush.msra.mxu0 0.0
    %407 = vmatpush.msra.mxu0 0.0
    %408 = vmatpush.msra.mxu0 0.0
    %409 = vmatpush.msra.mxu0 0.0
    %410 = vmatpush.msra.mxu0 0.0
    %411 = vmatpush.msra.mxu0 0.0
    %412 = vmatpush.msra.mxu0 0.0
    %413 = vmatpush.msra.mxu0 %v373
    %414 = vmatpush.msra.mxu0 %v372
    %415 = vmatpush.msra.mxu0 %v371
    %416 = vmatpush.msra.mxu0 %v370
    %417 = vmatpush.msra.mxu0 %v369
    %418 = vmatpush.msra.mxu0 %v368
    %419 = vmatpush.msra.mxu0 %v367
    %420 = vmatpush.msra.mxu0 %v366
    %421 = vmatmul.f32.gmra.mxu0 %v297
    %v422 = vpop.f32.mrf.mxu0
    %v423 = vadd.f32 %v403, %v422
    %424 = vdwg.mxu0
    %v425 = vld [vmem:[#allocation6] sm:$0x1]
    %v427 = vperm.slane %v425, 0
    %v429 = vadd.f32 %v423, %v427
    %v430 = vtanh.pop %v429
    %s431 = scalar_lea.vmem %s7, 8
    %432 = vst.msk [vmem:[%s431] sm:$0x3f] %vm250, %v430
    // Predicated region
    $region42: #{nmt_forward.9} parent=1 // pred_check
      _
    $region43: #{nmt_forward.9} parent=1 // pred_check_branch
      %434 = sbr.rel (0) target = $region45
    $region44: #{nmt_forward.9} parent=1 // pred_region
      _
    $region45: #{nmt_forward.9} parent=1 // pred_fallthru
      _
    // Predicated region
    $region46: #{nmt_forward.9} parent=1 // pred_check
      _
    $region47: #{nmt_forward.9} parent=1 // pred_check_branch
      %436 = sbr.rel (0) target = $region49
    $region48: #{nmt_forward.9} parent=1 // pred_region
      _
    $region49: #{nmt_forward.9} parent=1 // pred_fallthru
      _
    // Predicated region
    $region50: #{nmt_forward.9} parent=1 // pred_check
      _
    $region51: #{nmt_forward.9} parent=1 // pred_check_branch
      %438 = sbr.rel (0) target = $region53
    $region52: #{nmt_forward.9} parent=1 // pred_region
      _
    $region53: #{nmt_forward.9} parent=1 // pred_fallthru
      _
    // Predicated region
    $region54: #{nmt_forward.9} parent=1 // pred_check
      _
    $region55: #{nmt_forward.9} parent=1 // pred_check_branch
      %440 = sbr.rel (0) target = $region57
    $region56: #{nmt_forward.9} parent=1 // pred_region
      _
    $region57: #{nmt_forward.9} parent=1 // pred_fallthru
      _
    %441 = vsyncpa [#allocation3], 1
    %442 = vsyncpa [#allocation5], 1

</llo_original>
